<compile_context>
chip_gen: v6e
topology: v6e:2x2x1
jax: 0.10.0
libtpu: 0.0.40
codegen_flags: <defaults>
</compile_context>

<pallas_src>
import functools

import jax
import jax.numpy as jnp
from jax.experimental import pallas as pl
from jax.experimental.pallas import tpu as pltpu

_LN_EPS = 1e-5


def _vmem_capacity_bytes():
    try:
        return int(pltpu.get_tpu_info().vmem_capacity_bytes)
    except Exception:
        return 128 * 1024 * 1024


_VMEM_CAP = _vmem_capacity_bytes()
# Leave headroom for Mosaic-internal scratch: ~80% of physical VMEM.
_VMEM_LIMIT = max(32 * 1024 * 1024, min(int(_VMEM_CAP * 0.8), 112 * 1024 * 1024))
_TILE_BUDGET = int(_VMEM_LIMIT * 0.7)


def _cparams(semantics):
    return pltpu.CompilerParams(dimension_semantics=semantics,
                                vmem_limit_bytes=_VMEM_LIMIT)


def _pick_tile(n, per_row_bytes=0, fixed_bytes=0, budget=_TILE_BUDGET,
               candidates=(1024, 512, 256, 128, 64, 32, 16, 8)):
    """Largest candidate tile dividing n whose double-buffered footprint fits."""
    fallback = None
    for c in candidates:
        if c <= n and n % c == 0:
            if fallback is None:
                fallback = c
            if fixed_bytes + 2 * c * per_row_bytes <= budget:
                return c
    return fallback if fallback is not None else n


# ----------------------------------------------------------------------------
# Kernel 1: attn LayerNorm + QKV projections (split) + RoPE (fused)
# ----------------------------------------------------------------------------
def _ln_qkv_rope_kernel(x_ref, g_ref, b_ref,
                        wq_ref, bq_ref, wk_ref, bk_ref, wv_ref, bv_ref,
                        cos_ref, sin_ref,
                        xln_ref, q_ref, k_ref, v_ref,
                        *, head_dim, eps):
    D = x_ref.shape[-1]
    half = head_dim // 2

    x = x_ref[0].astype(jnp.float32)                      # (ts, D)
    mu = jnp.mean(x, axis=-1, keepdims=True)
    xc = x - mu
    var = jnp.mean(xc * xc, axis=-1, keepdims=True)
    xl = xc * jax.lax.rsqrt(var + eps) * g_ref[...] + b_ref[...]
    xln_ref[0] = xl.astype(xln_ref.dtype)

    xb = xl.astype(jnp.bfloat16)
    cos = cos_ref[...]
    sin = sin_ref[...]
    # lane mask selecting the first half of every head block (static).
    lane = jax.lax.broadcasted_iota(jnp.int32, (1, D), 1)
    first_half = (lane % head_dim) < half

    def _roll_lanes(t, shift):
        if D % 128 == 0:
            return pltpu.roll(t, shift % D, axis=1)       # XLU lane rotate
        return jnp.roll(t, shift, axis=1)                 # slice+concat fallback

    def _rope(t):
        left = _roll_lanes(t, half)                       # t1 -> second-half slots
        right = _roll_lanes(t, -half)                     # t2 -> first-half slots
        rot = jnp.where(first_half, -right, left)         # per-head rotate_half
        return t * cos + rot * sin

    q = jnp.dot(xb, wq_ref[...], preferred_element_type=jnp.float32) + bq_ref[...]
    q_ref[0] = _rope(q).astype(q_ref.dtype)
    k = jnp.dot(xb, wk_ref[...], preferred_element_type=jnp.float32) + bk_ref[...]
    k_ref[0] = _rope(k).astype(k_ref.dtype)
    v = jnp.dot(xb, wv_ref[...], preferred_element_type=jnp.float32) + bv_ref[...]
    v_ref[0] = v.astype(v_ref.dtype)


def ln_qkv_rope(x, gamma, beta, wq, bq, wk, bk, wv, bv, cos, sin, head_dim):
    B, S, D = x.shape
    per_row = D * 22                      # x, cos, sin, xln (f32) + q/k/v (bf16)
    fixed = 12 * D * D + 64 * D           # three bf16 (D,D) weights, double-buffered
    ts = _pick_tile(S, per_row, fixed)
    grid = (B, S // ts)
    row3 = pl.BlockSpec((1, ts, D), lambda b, s: (b, s, 0))
    rope_spec = pl.BlockSpec((ts, D), lambda b, s: (s, 0))
    const = lambda shape: pl.BlockSpec(shape, lambda b, s: (0, 0))
    out_shapes = (
        jax.ShapeDtypeStruct((B, S, D), jnp.float32),     # x_ln (residual base)
        jax.ShapeDtypeStruct((B, S, D), jnp.bfloat16),    # q (RoPE applied)
        jax.ShapeDtypeStruct((B, S, D), jnp.bfloat16),    # k (RoPE applied)
        jax.ShapeDtypeStruct((B, S, D), jnp.bfloat16),    # v
    )
    return pl.pallas_call(
        functools.partial(_ln_qkv_rope_kernel, head_dim=head_dim, eps=_LN_EPS),
        out_shape=out_shapes,
        grid=grid,
        in_specs=[
            row3,
            const((1, D)), const((1, D)),
            const((D, D)), const((1, D)),
            const((D, D)), const((1, D)),
            const((D, D)), const((1, D)),
            rope_spec, rope_spec,
        ],
        out_specs=(row3, row3, row3, row3),
        compiler_params=_cparams(("parallel", "parallel")),
    )(x, gamma.reshape(1, D), beta.reshape(1, D),
      wq, bq.reshape(1, D), wk, bk.reshape(1, D), wv, bv.reshape(1, D), cos, sin)


# ----------------------------------------------------------------------------
# Kernel 2: pair-biased attention + struct_out + pair LN + struct residuals
#           + fused attention output projection + first x residual
# ----------------------------------------------------------------------------
def _fused_attention_kernel(q_ref, k_ref, v_ref, se_ref, xres_ref,
                            wpb_ref, bpb_ref, wso_ref, bso_ref, pg_ref, pb_ref,
                            wo_ref, bo_ref,
                            x1_ref, attn_ref, sf_ref,
                            o_scr,
                            *, num_heads, head_dim, scale, eps):
    q = q_ref[0]                                          # (tq, D) bf16
    k = k_ref[0]                                          # (S,  D) bf16
    v = v_ref[0]                                          # (S,  D) bf16
    tq = q.shape[0]
    S = k.shape[0]
    P = se_ref.shape[-1]

    # Pair bias for ALL heads in one MXU matmul: (tq*S, P) @ (P, H).
    se2 = se_ref[0].reshape(tq * S, P).astype(jnp.bfloat16)
    bias3 = (jnp.dot(se2, wpb_ref[...], preferred_element_type=jnp.float32)
             + bpb_ref[...]).reshape(tq, S, num_heads)

    dn = (((1,), (1,)), ((), ()))                         # contract head_dim of q/k
    p_heads = []
    for h in range(num_heads):
        lo = h * head_dim
        hi = lo + head_dim
        qh, kh, vh = q[:, lo:hi], k[:, lo:hi], v[:, lo:hi]

        s = jax.lax.dot_general(qh, kh, dn,
                                preferred_element_type=jnp.float32) * scale
        s = s + bias3[:, :, h]
        m = jnp.max(s, axis=-1, keepdims=True)
        e = jnp.exp(s - m)
        l = jnp.sum(e, axis=-1, keepdims=True)
        p = e / l                                         # exact softmax (map is returned)

        attn_ref[0, h] = p.astype(attn_ref.dtype)
        # write the per-head context directly into the (tq, D) VMEM scratch.
        o_scr[:, lo:hi] = jnp.dot(p.astype(jnp.bfloat16), vh,
                                  preferred_element_type=jnp.float32)
        p_heads.append(p)

    # struct_out for ALL heads in one MXU matmul: (tq*S, H) @ (H, P).
    p_all = jnp.stack(p_heads, axis=-1).reshape(tq * S, num_heads)
    so = jnp.dot(p_all.astype(jnp.bfloat16), wso_ref[...],
                 preferred_element_type=jnp.float32).reshape(tq, S, P)

    # struct residual + pair LayerNorm + second struct residual.
    s1 = se_ref[0].astype(jnp.float32) + so + bso_ref[...]
    mu = jnp.mean(s1, axis=-1, keepdims=True)
    xc = s1 - mu
    var = jnp.mean(xc * xc, axis=-1, keepdims=True)
    s_ln = xc * jax.lax.rsqrt(var + eps) * pg_ref[...] + pb_ref[...]
    sf_ref[0] = (s1 + s_ln).astype(sf_ref.dtype)

    # fused output projection + first residual: x1 = attn_ln(x) + W_o.o + b_o.
    mh = jnp.dot(o_scr[...].astype(jnp.bfloat16), wo_ref[...],
                 preferred_element_type=jnp.float32) + bo_ref[...]
    x1_ref[0] = (xres_ref[0].astype(jnp.float32) + mh).astype(x1_ref.dtype)


def fused_attention(q, k, v, struct_embed, x_ln,
                    wpb, bpb, wso, bso, pair_g, pair_b, wo, bo,
                    num_heads, head_dim):
    B, S, D = q.shape
    P = struct_embed.shape[-1]
    H = num_heads
    per_row = S * P * 8 + S * H * 4 + D * 14              # se/sf, attn, q, x_ln, x1, o_scr
    fixed = 8 * S * D + 4 * D * D + 8 * P * H + 16 * (P + D + H)
    tq = _pick_tile(S, per_row, fixed, candidates=(512, 256, 128, 64, 32, 16, 8))
    grid = (B, S // tq)
    scale = 1.0 / (head_dim ** 0.5)
    const = lambda shape: pl.BlockSpec(shape, lambda b, i: (0, 0))

    out_shapes = (
        jax.ShapeDtypeStruct((B, S, D), jnp.float32),                # x1 = x_ln + out-proj
        jax.ShapeDtypeStruct((B, H, S, S), jnp.float32),             # attention map
        jax.ShapeDtypeStruct((B, S, S, P), struct_embed.dtype),      # final struct path
    )
    return pl.pallas_call(
        functools.partial(_fused_attention_kernel, num_heads=H, head_dim=head_dim,
                          scale=scale, eps=_LN_EPS),
        out_shape=out_shapes,
        grid=grid,
        in_specs=[
            pl.BlockSpec((1, tq, D), lambda b, i: (b, i, 0)),        # q tile (lane-dense)
            pl.BlockSpec((1, S, D), lambda b, i: (b, 0, 0)),         # K (resident per batch)
            pl.BlockSpec((1, S, D), lambda b, i: (b, 0, 0)),         # V (resident per batch)
            pl.BlockSpec((1, tq, S, P), lambda b, i: (b, i, 0, 0)),  # struct rows for q tile
            pl.BlockSpec((1, tq, D), lambda b, i: (b, i, 0)),        # x_ln residual base
            const((P, H)), const((1, H)),                            # w/b pair_bias
            const((H, P)), const((1, P)),                            # w/b struct_out
            const((1, P)), const((1, P)),                            # pair LN gamma/beta
            const((D, D)), const((1, D)),                            # W_o, b_o
        ],
        out_specs=(
            pl.BlockSpec((1, tq, D), lambda b, i: (b, i, 0)),
            pl.BlockSpec((1, H, tq, S), lambda b, i: (b, 0, i, 0)),
            pl.BlockSpec((1, tq, S, P), lambda b, i: (b, i, 0, 0)),
        ),
        scratch_shapes=[pltpu.VMEM((tq, D), jnp.float32)],
        compiler_params=_cparams(("parallel", "parallel")),
    )(q, k, v, struct_embed, x_ln,
      wpb, bpb.reshape(1, H), wso, bso.reshape(1, P),
      pair_g.reshape(1, P), pair_b.reshape(1, P),
      wo, bo.reshape(1, D))


# ----------------------------------------------------------------------------
# Kernel 3: out LayerNorm + SwiGLU transition + output linear + residual
# ----------------------------------------------------------------------------
def _ln_transition_residual_kernel(x_ref, g_ref, b_ref, w1_ref, b1_ref, wg_ref, bg_ref,
                                   beta_ref, w2_ref, b2_ref, y_ref, *, eps):
    x = x_ref[...].astype(jnp.float32)
    mu = jnp.mean(x, axis=-1, keepdims=True)
    xc = x - mu
    var = jnp.mean(xc * xc, axis=-1, keepdims=True)
    xl = xc * jax.lax.rsqrt(var + eps) * g_ref[...] + b_ref[...]

    xb = xl.astype(jnp.bfloat16)
    lin = jnp.dot(xb, w1_ref[...], preferred_element_type=jnp.float32) + b1_ref[...]
    gate = jnp.dot(xb, wg_ref[...], preferred_element_type=jnp.float32) + bg_ref[...]
    beta = beta_ref[0, 0]
    hidden = (lin * jax.nn.sigmoid(beta * lin)) * gate
    out = jnp.dot(hidden.astype(jnp.bfloat16), w2_ref[...],
                  preferred_element_type=jnp.float32) + b2_ref[...]
    y_ref[...] = (x + out).astype(y_ref.dtype)


def ln_transition_residual(x2d, gamma, beta_ln, w1, b1, wg, bg, swiglu_beta, w2, b2):
    R, D = x2d.shape
    Hd = w1.shape[1]
    per_row = D * 8 + Hd * 12
    fixed = 12 * D * Hd + 32 * (D + Hd)
    tr = _pick_tile(R, per_row, fixed)
    const = lambda shape: pl.BlockSpec(shape, lambda i: (0, 0))
    return pl.pallas_call(
        functools.partial(_ln_transition_residual_kernel, eps=_LN_EPS),
        out_shape=jax.ShapeDtypeStruct((R, D), x2d.dtype),
        grid=(R // tr,),
        in_specs=[
            pl.BlockSpec((tr, D), lambda i: (i, 0)),
            const((1, D)), const((1, D)),
            const((D, Hd)), const((1, Hd)),
            const((D, Hd)), const((1, Hd)),
            const((1, 1)),
            const((Hd, D)), const((1, D)),
        ],
        out_specs=pl.BlockSpec((tr, D), lambda i: (i, 0)),
        compiler_params=_cparams(("parallel",)),
    )(x2d, gamma.reshape(1, D), beta_ln.reshape(1, D),
      w1, b1.reshape(1, Hd), wg, bg.reshape(1, Hd),
      swiglu_beta.reshape(1, 1), w2, b2.reshape(1, D))


# ----------------------------------------------------------------------------
# Parameters + top-level forward
# ----------------------------------------------------------------------------
def init_params(key, D, P, H, transition_factor=4):
    Hd = int(2.0 / 3.0 * transition_factor * D)
    ks = jax.random.split(key, 8)
    s = 0.02

    def nrm(k, shape):
        return jax.random.normal(k, shape, jnp.float32) * s

    return {
        "attn_ln_g": jnp.ones((D,), jnp.float32), "attn_ln_b": jnp.zeros((D,), jnp.float32),
        "out_ln_g": jnp.ones((D,), jnp.float32), "out_ln_b": jnp.zeros((D,), jnp.float32),
        "pair_ln_g": jnp.ones((P,), jnp.float32), "pair_ln_b": jnp.zeros((P,), jnp.float32),
        "wqkv": nrm(ks[0], (D, 3 * D)), "bqkv": jnp.zeros((3 * D,), jnp.float32),
        "wo": nrm(ks[1], (D, D)), "bo": jnp.zeros((D,), jnp.float32),
        "w_pair_bias": nrm(ks[2], (P, H)), "b_pair_bias": jnp.zeros((H,), jnp.float32),
        "w_struct_out": nrm(ks[3], (H, P)), "b_struct_out": jnp.zeros((P,), jnp.float32),
        "w1": nrm(ks[4], (D, Hd)), "b1": jnp.zeros((Hd,), jnp.float32),
        "wg": nrm(ks[5], (D, Hd)), "bg": jnp.zeros((Hd,), jnp.float32),
        "swiglu_beta": jnp.ones((1,), jnp.float32),
        "w2": nrm(ks[6], (Hd, D)), "b2": jnp.zeros((D,), jnp.float32),
    }


def transformer_block(params, x, struct_embed, num_heads):
    B, S, D = x.shape
    H = num_heads
    Dh = D // H
    bf16 = jnp.bfloat16

    # RoPE tables, tiled across heads so q/k stay in lane-dense (B, S, D) layout.
    half = Dh // 2
    inv_freq = 1.0 / (10000.0 ** (jnp.arange(half, dtype=jnp.float32) / half))
    freqs = jnp.arange(S, dtype=jnp.float32)[:, None] * inv_freq[None, :]     # (S, half)
    cos = jnp.tile(jnp.concatenate([jnp.cos(freqs), jnp.cos(freqs)], -1), (1, H))
    sin = jnp.tile(jnp.concatenate([jnp.sin(freqs), jnp.sin(freqs)], -1), (1, H))

    wqkv = params["wqkv"].astype(bf16)
    wq, wk, wv = wqkv[:, :D], wqkv[:, D:2 * D], wqkv[:, 2 * D:]
    bqkv = params["bqkv"]
    bq, bk, bv = bqkv[:D], bqkv[D:2 * D], bqkv[2 * D:]

    # ---- fused attn LayerNorm + QKV (split) + RoPE ----
    x_ln, q, k, v = ln_qkv_rope(x, params["attn_ln_g"], params["attn_ln_b"],
                                wq, bq, wk, bk, wv, bv, cos, sin, Dh)

    # ---- fused pair-biased attention + struct path + out-proj + residual ----
    x1, attn, struct_final = fused_attention(
        q, k, v, struct_embed, x_ln,
        params["w_pair_bias"].astype(bf16), params["b_pair_bias"],
        params["w_struct_out"].astype(bf16), params["b_struct_out"],
        params["pair_ln_g"], params["pair_ln_b"],
        params["wo"].astype(bf16), params["bo"], H, Dh)

    # ---- out LayerNorm + SwiGLU transition + residual ----
    x_out = ln_transition_residual(
        x1.reshape(B * S, D), params["out_ln_g"], params["out_ln_b"],
        params["w1"].astype(bf16), params["b1"],
        params["wg"].astype(bf16), params["bg"],
        params["swiglu_beta"],
        params["w2"].astype(bf16), params["b2"])

    return x_out.reshape(B, S, D), struct_final, attn


if __name__ == "__main__":
    B, S, D, P, H = 2, 8, 32, 16, 4
    key = jax.random.PRNGKey(0)
    kx, kse, kp = jax.random.split(key, 3)
    x = jax.random.normal(kx, (B, S, D), jnp.float32)
    struct_embed = jax.random.normal(kse, (B, S, S, P), jnp.float32)
    params = init_params(kp, D, P, H)

    out_x, out_struct, attn = transformer_block(params, x, struct_embed, num_heads=H)
    jax.block_until_ready((out_x, out_struct, attn))

    assert out_x.shape == (B, S, D)
    assert out_struct.shape == (B, S, S, P)
    assert attn.shape == (B, H, S, S)
    assert bool(jnp.all(jnp.isfinite(out_x))) and bool(jnp.all(jnp.isfinite(out_struct)))
    print("KERNEL_OK")
</pallas_src>

<mosaic_0001>
module attributes {stable_mosaic.version = 11 : i64} {
  func.func @_ln_qkv_rope_kernel(%arg0: i32, %arg1: i32, %arg2: memref<1x8x32xf32, #tpu.memory_space<vmem>>, %arg3: memref<1x32xf32, #tpu.memory_space<vmem>>, %arg4: memref<1x32xf32, #tpu.memory_space<vmem>>, %arg5: memref<32x32xbf16, #tpu.memory_space<vmem>>, %arg6: memref<1x32xf32, #tpu.memory_space<vmem>>, %arg7: memref<32x32xbf16, #tpu.memory_space<vmem>>, %arg8: memref<1x32xf32, #tpu.memory_space<vmem>>, %arg9: memref<32x32xbf16, #tpu.memory_space<vmem>>, %arg10: memref<1x32xf32, #tpu.memory_space<vmem>>, %arg11: memref<8x32xf32, #tpu.memory_space<vmem>>, %arg12: memref<8x32xf32, #tpu.memory_space<vmem>>, %arg13: memref<1x8x32xf32, #tpu.memory_space<vmem>>, %arg14: memref<1x8x32xbf16, #tpu.memory_space<vmem>>, %arg15: memref<1x8x32xbf16, #tpu.memory_space<vmem>>, %arg16: memref<1x8x32xbf16, #tpu.memory_space<vmem>>) attributes {dimension_semantics = [#tpu.dimension_semantics<parallel>, #tpu.dimension_semantics<parallel>], iteration_bounds = array<i64: 2, 1>, scalar_prefetch = 0 : i64, scratch_operands = 0 : i64, tpu.core_type = #tpu.core_type<tc>, window_params = [{transform_indices = @transform_0, window_bounds = array<i64: 1, 8, 32>}, {pipeline_mode = #tpu.pipeline_mode<synchronous>, transform_indices = @transform_1, window_bounds = array<i64: 1, 32>}, {pipeline_mode = #tpu.pipeline_mode<synchronous>, transform_indices = @transform_2, window_bounds = array<i64: 1, 32>}, {pipeline_mode = #tpu.pipeline_mode<synchronous>, transform_indices = @transform_3, window_bounds = array<i64: 32, 32>}, {pipeline_mode = #tpu.pipeline_mode<synchronous>, transform_indices = @transform_4, window_bounds = array<i64: 1, 32>}, {pipeline_mode = #tpu.pipeline_mode<synchronous>, transform_indices = @transform_5, window_bounds = array<i64: 32, 32>}, {pipeline_mode = #tpu.pipeline_mode<synchronous>, transform_indices = @transform_6, window_bounds = array<i64: 1, 32>}, {pipeline_mode = #tpu.pipeline_mode<synchronous>, transform_indices = @transform_7, window_bounds = array<i64: 32, 32>}, {pipeline_mode = #tpu.pipeline_mode<synchronous>, transform_indices = @transform_8, window_bounds = array<i64: 1, 32>}, {transform_indices = @transform_9, window_bounds = array<i64: 8, 32>}, {transform_indices = @transform_10, window_bounds = array<i64: 8, 32>}, {transform_indices = @transform_11, window_bounds = array<i64: 1, 8, 32>}, {transform_indices = @transform_12, window_bounds = array<i64: 1, 8, 32>}, {transform_indices = @transform_13, window_bounds = array<i64: 1, 8, 32>}, {transform_indices = @transform_14, window_bounds = array<i64: 1, 8, 32>}]} {
    %c0 = arith.constant 0 : index
    %c0_0 = arith.constant 0 : index
    %c0_1 = arith.constant 0 : index
    %0 = vector.load %arg2[%c0, %c0_0, %c0_1] : memref<1x8x32xf32, #tpu.memory_space<vmem>>, vector<1x8x32xf32>
    %1 = vector.shape_cast %0 : vector<1x8x32xf32> to vector<8x32xf32>
    %cst = arith.constant dense<0.000000e+00> : vector<8xf32>
    %2 = vector.multi_reduction <add>, %1, %cst [1] : vector<8x32xf32> to vector<8xf32>
    %3 = vector.shape_cast %2 : vector<8xf32> to vector<8x1xf32>
    %cst_2 = arith.constant 3.200000e+01 : f32
    %4 = vector.broadcast %cst_2 : f32 to vector<8x1xf32>
    %5 = arith.divf %3, %4 : vector<8x1xf32>
    %6 = vector.broadcast %5 : vector<8x1xf32> to vector<8x32xf32>
    %7 = arith.subf %1, %6 : vector<8x32xf32>
    %8 = arith.mulf %7, %7 : vector<8x32xf32>
    %cst_3 = arith.constant dense<0.000000e+00> : vector<8xf32>
    %9 = vector.multi_reduction <add>, %8, %cst_3 [1] : vector<8x32xf32> to vector<8xf32>
    %10 = vector.shape_cast %9 : vector<8xf32> to vector<8x1xf32>
    %cst_4 = arith.constant 3.200000e+01 : f32
    %11 = vector.broadcast %cst_4 : f32 to vector<8x1xf32>
    %12 = arith.divf %10, %11 : vector<8x1xf32>
    %cst_5 = arith.constant 9.99999974E-6 : f32
    %13 = vector.broadcast %cst_5 : f32 to vector<8x1xf32>
    %14 = arith.addf %12, %13 : vector<8x1xf32>
    %15 = math.rsqrt %14 : vector<8x1xf32>
    %16 = vector.broadcast %15 : vector<8x1xf32> to vector<8x32xf32>
    %17 = arith.mulf %7, %16 : vector<8x32xf32>
    %c0_6 = arith.constant 0 : index
    %c0_7 = arith.constant 0 : index
    %18 = vector.load %arg3[%c0_6, %c0_7] : memref<1x32xf32, #tpu.memory_space<vmem>>, vector<1x32xf32>
    %19 = vector.broadcast %18 : vector<1x32xf32> to vector<8x32xf32>
    %20 = arith.mulf %17, %19 : vector<8x32xf32>
    %c0_8 = arith.constant 0 : index
    %c0_9 = arith.constant 0 : index
    %21 = vector.load %arg4[%c0_8, %c0_9] : memref<1x32xf32, #tpu.memory_space<vmem>>, vector<1x32xf32>
    %22 = vector.broadcast %21 : vector<1x32xf32> to vector<8x32xf32>
    %23 = arith.addf %20, %22 : vector<8x32xf32>
    %c0_10 = arith.constant 0 : index
    %c0_11 = arith.constant 0 : index
    %c0_12 = arith.constant 0 : index
    %24 = vector.load %arg13[%c0_10, %c0_11, %c0_12] : memref<1x8x32xf32, #tpu.memory_space<vmem>>, vector<1x8x32xf32>
    %25 = vector.shape_cast %24 : vector<1x8x32xf32> to vector<8x32xf32>
    %26 = vector.shape_cast %23 : vector<8x32xf32> to vector<1x8x32xf32>
    tpu.vector_store %arg13[%c0_10, %c0_11, %c0_12], %26 {strides = array<i32>} : memref<1x8x32xf32, #tpu.memory_space<vmem>>, vector<1x8x32xf32>,
    %27 = arith.truncf %23 : vector<8x32xf32> to vector<8x32xbf16>
    %c0_13 = arith.constant 0 : index
    %c0_14 = arith.constant 0 : index
    %28 = vector.load %arg11[%c0_13, %c0_14] : memref<8x32xf32, #tpu.memory_space<vmem>>, vector<8x32xf32>
    %c0_15 = arith.constant 0 : index
    %c0_16 = arith.constant 0 : index
    %29 = vector.load %arg12[%c0_15, %c0_16] : memref<8x32xf32, #tpu.memory_space<vmem>>, vector<8x32xf32>
    %30 = tpu.iota {dimensions = array<i32: 1>} : vector<1x32xi32>
    %c8_i32 = arith.constant 8 : i32
    %c0_i32 = arith.constant 0 : i32
    %31 = arith.cmpi eq, %c8_i32, %c0_i32 : i32
    %c1_i32 = arith.constant 1 : i32
    %32 = arith.select %31, %c1_i32, %c8_i32 : i32
    %33 = vector.broadcast %32 : i32 to vector<1x32xi32>
    %34 = arith.remsi %30, %33 : vector<1x32xi32>
    %c0_i32_17 = arith.constant 0 : i32
    %35 = vector.broadcast %c0_i32_17 : i32 to vector<1x32xi32>
    %36 = arith.cmpi ne, %34, %35 : vector<1x32xi32>
    %c0_i32_18 = arith.constant 0 : i32
    %37 = vector.broadcast %c0_i32_18 : i32 to vector<1x32xi32>
    %38 = arith.cmpi slt, %34, %37 : vector<1x32xi32>
    %c0_i32_19 = arith.constant 0 : i32
    %39 = arith.cmpi slt, %32, %c0_i32_19 : i32
    %40 = vector.broadcast %39 : i1 to vector<1x32xi1>
    %41 = vector.broadcast %40 : vector<1x32xi1> to vector<1x32xi1>
    %42 = arith.xori %38, %41 : vector<1x32xi1>
    %43 = arith.andi %42, %36 : vector<1x32xi1>
    %44 = vector.broadcast %32 : i32 to vector<1x32xi32>
    %45 = arith.addi %34, %44 : vector<1x32xi32>
    %46 = arith.select %43, %45, %34 : vector<1x32xi1>, vector<1x32xi32>
    %c4_i32 = arith.constant 4 : i32
    %47 = vector.broadcast %c4_i32 : i32 to vector<1x32xi32>
    %48 = arith.cmpi slt, %46, %47 : vector<1x32xi32>
    %c0_20 = arith.constant 0 : index
    %c0_21 = arith.constant 0 : index
    %49 = vector.load %arg5[%c0_20, %c0_21] : memref<32x32xbf16, #tpu.memory_space<vmem>>, vector<32x32xbf16>
    %cst_22 = arith.constant dense<0.000000e+00> : vector<8x32xf32>
    %50 = tpu.matmul %27, %49, %cst_22 {dimension_numbers = #tpu.dot_dimension_numbers<[1], [0], [0], [1], [0, 0, 1, 1], [], []>} : vector<8x32xbf16>, vector<32x32xbf16>, vector<8x32xf32> -> vector<8x32xf32>
    %c0_23 = arith.constant 0 : index
    %c0_24 = arith.constant 0 : index
    %51 = vector.load %arg6[%c0_23, %c0_24] : memref<1x32xf32, #tpu.memory_space<vmem>>, vector<1x32xf32>
    %52 = vector.broadcast %51 : vector<1x32xf32> to vector<8x32xf32>
    %53 = arith.addf %50, %52 : vector<8x32xf32>
    %54 = vector.extract_strided_slice %53 {offsets = [0, 28], sizes = [8, 4], strides = [1, 1]} : vector<8x32xf32> to vector<8x4xf32>
    %55 = vector.extract_strided_slice %53 {offsets = [0, 0], sizes = [8, 28], strides = [1, 1]} : vector<8x32xf32> to vector<8x28xf32>
    %56 = tpu.concatenate %54, %55 in 1 : vector<8x4xf32>, vector<8x28xf32> -> vector<8x32xf32>
    %57 = vector.extract_strided_slice %53 {offsets = [0, 4], sizes = [8, 28], strides = [1, 1]} : vector<8x32xf32> to vector<8x28xf32>
    %58 = vector.extract_strided_slice %53 {offsets = [0, 0], sizes = [8, 4], strides = [1, 1]} : vector<8x32xf32> to vector<8x4xf32>
    %59 = tpu.concatenate %57, %58 in 1 : vector<8x28xf32>, vector<8x4xf32> -> vector<8x32xf32>
    %cst_25 = arith.constant 0.000000e+00 : f32
    %60 = vector.broadcast %cst_25 : f32 to vector<8x32xf32>
    %61 = arith.subf %60, %59 : vector<8x32xf32>
    %62 = vector.shape_cast %48 : vector<1x32xi1> to vector<1x32xi1>
    %63 = vector.broadcast %62 : vector<1x32xi1> to vector<8x32xi1>
    %64 = arith.select %63, %61, %56 : vector<8x32xi1>, vector<8x32xf32>
    %65 = arith.mulf %53, %28 : vector<8x32xf32>
    %66 = arith.mulf %64, %29 : vector<8x32xf32>
    %67 = arith.addf %65, %66 : vector<8x32xf32>
    %68 = arith.truncf %67 : vector<8x32xf32> to vector<8x32xbf16>
    %c0_26 = arith.constant 0 : index
    %c0_27 = arith.constant 0 : index
    %c0_28 = arith.constant 0 : index
    %69 = vector.load %arg14[%c0_26, %c0_27, %c0_28] : memref<1x8x32xbf16, #tpu.memory_space<vmem>>, vector<1x8x32xbf16>
    %70 = vector.shape_cast %69 : vector<1x8x32xbf16> to vector<8x32xbf16>
    %71 = vector.shape_cast %68 : vector<8x32xbf16> to vector<1x8x32xbf16>
    tpu.vector_store %arg14[%c0_26, %c0_27, %c0_28], %71 {strides = array<i32>} : memref<1x8x32xbf16, #tpu.memory_space<vmem>>, vector<1x8x32xbf16>,
    %c0_29 = arith.constant 0 : index
    %c0_30 = arith.constant 0 : index
    %72 = vector.load %arg7[%c0_29, %c0_30] : memref<32x32xbf16, #tpu.memory_space<vmem>>, vector<32x32xbf16>
    %cst_31 = arith.constant dense<0.000000e+00> : vector<8x32xf32>
    %73 = tpu.matmul %27, %72, %cst_31 {dimension_numbers = #tpu.dot_dimension_numbers<[1], [0], [0], [1], [0, 0, 1, 1], [], []>} : vector<8x32xbf16>, vector<32x32xbf16>, vector<8x32xf32> -> vector<8x32xf32>
    %c0_32 = arith.constant 0 : index
    %c0_33 = arith.constant 0 : index
    %74 = vector.load %arg8[%c0_32, %c0_33] : memref<1x32xf32, #tpu.memory_space<vmem>>, vector<1x32xf32>
    %75 = vector.broadcast %74 : vector<1x32xf32> to vector<8x32xf32>
    %76 = arith.addf %73, %75 : vector<8x32xf32>
    %77 = vector.extract_strided_slice %76 {offsets = [0, 28], sizes = [8, 4], strides = [1, 1]} : vector<8x32xf32> to vector<8x4xf32>
    %78 = vector.extract_strided_slice %76 {offsets = [0, 0], sizes = [8, 28], strides = [1, 1]} : vector<8x32xf32> to vector<8x28xf32>
    %79 = tpu.concatenate %77, %78 in 1 : vector<8x4xf32>, vector<8x28xf32> -> vector<8x32xf32>
    %80 = vector.extract_strided_slice %76 {offsets = [0, 4], sizes = [8, 28], strides = [1, 1]} : vector<8x32xf32> to vector<8x28xf32>
    %81 = vector.extract_strided_slice %76 {offsets = [0, 0], sizes = [8, 4], strides = [1, 1]} : vector<8x32xf32> to vector<8x4xf32>
    %82 = tpu.concatenate %80, %81 in 1 : vector<8x28xf32>, vector<8x4xf32> -> vector<8x32xf32>
    %cst_34 = arith.constant 0.000000e+00 : f32
    %83 = vector.broadcast %cst_34 : f32 to vector<8x32xf32>
    %84 = arith.subf %83, %82 : vector<8x32xf32>
    %85 = vector.shape_cast %48 : vector<1x32xi1> to vector<1x32xi1>
    %86 = vector.broadcast %85 : vector<1x32xi1> to vector<8x32xi1>
    %87 = arith.select %86, %84, %79 : vector<8x32xi1>, vector<8x32xf32>
    %88 = arith.mulf %76, %28 : vector<8x32xf32>
    %89 = arith.mulf %87, %29 : vector<8x32xf32>
    %90 = arith.addf %88, %89 : vector<8x32xf32>
    %91 = arith.truncf %90 : vector<8x32xf32> to vector<8x32xbf16>
    %c0_35 = arith.constant 0 : index
    %c0_36 = arith.constant 0 : index
    %c0_37 = arith.constant 0 : index
    %92 = vector.load %arg15[%c0_35, %c0_36, %c0_37] : memref<1x8x32xbf16, #tpu.memory_space<vmem>>, vector<1x8x32xbf16>
    %93 = vector.shape_cast %92 : vector<1x8x32xbf16> to vector<8x32xbf16>
    %94 = vector.shape_cast %91 : vector<8x32xbf16> to vector<1x8x32xbf16>
    tpu.vector_store %arg15[%c0_35, %c0_36, %c0_37], %94 {strides = array<i32>} : memref<1x8x32xbf16, #tpu.memory_space<vmem>>, vector<1x8x32xbf16>,
    %c0_38 = arith.constant 0 : index
    %c0_39 = arith.constant 0 : index
    %95 = vector.load %arg9[%c0_38, %c0_39] : memref<32x32xbf16, #tpu.memory_space<vmem>>, vector<32x32xbf16>
    %cst_40 = arith.constant dense<0.000000e+00> : vector<8x32xf32>
    %96 = tpu.matmul %27, %95, %cst_40 {dimension_numbers = #tpu.dot_dimension_numbers<[1], [0], [0], [1], [0, 0, 1, 1], [], []>} : vector<8x32xbf16>, vector<32x32xbf16>, vector<8x32xf32> -> vector<8x32xf32>
    %c0_41 = arith.constant 0 : index
    %c0_42 = arith.constant 0 : index
    %97 = vector.load %arg10[%c0_41, %c0_42] : memref<1x32xf32, #tpu.memory_space<vmem>>, vector<1x32xf32>
    %98 = vector.broadcast %97 : vector<1x32xf32> to vector<8x32xf32>
    %99 = arith.addf %96, %98 : vector<8x32xf32>
    %100 = arith.truncf %99 : vector<8x32xf32> to vector<8x32xbf16>
    %c0_43 = arith.constant 0 : index
    %c0_44 = arith.constant 0 : index
    %c0_45 = arith.constant 0 : index
    %101 = vector.load %arg16[%c0_43, %c0_44, %c0_45] : memref<1x8x32xbf16, #tpu.memory_space<vmem>>, vector<1x8x32xbf16>
    %102 = vector.shape_cast %101 : vector<1x8x32xbf16> to vector<8x32xbf16>
    %103 = vector.shape_cast %100 : vector<8x32xbf16> to vector<1x8x32xbf16>
    tpu.vector_store %arg16[%c0_43, %c0_44, %c0_45], %103 {strides = array<i32>} : memref<1x8x32xbf16, #tpu.memory_space<vmem>>, vector<1x8x32xbf16>,
    return
  }
  func.func @transform_0(%arg0: i32, %arg1: i32) -> (i32, i32, i32) {
    %c0_i32 = arith.constant 0 : i32
    %c0_i32_0 = arith.constant 0 : i32
    return %arg0, %arg1, %c0_i32 : i32, i32, i32
  }
  func.func @transform_1(%arg0: i32, %arg1: i32) -> (i32, i32) {
    %c0_i32 = arith.constant 0 : i32
    %c0_i32_0 = arith.constant 0 : i32
    %c0_i32_1 = arith.constant 0 : i32
    return %c0_i32, %c0_i32_0 : i32, i32
  }
  func.func @transform_2(%arg0: i32, %arg1: i32) -> (i32, i32) {
    %c0_i32 = arith.constant 0 : i32
    %c0_i32_0 = arith.constant 0 : i32
    %c0_i32_1 = arith.constant 0 : i32
    return %c0_i32, %c0_i32_0 : i32, i32
  }
  func.func @transform_3(%arg0: i32, %arg1: i32) -> (i32, i32) {
    %c0_i32 = arith.constant 0 : i32
    %c0_i32_0 = arith.constant 0 : i32
    %c0_i32_1 = arith.constant 0 : i32
    return %c0_i32, %c0_i32_0 : i32, i32
  }
  func.func @transform_4(%arg0: i32, %arg1: i32) -> (i32, i32) {
    %c0_i32 = arith.constant 0 : i32
    %c0_i32_0 = arith.constant 0 : i32
    %c0_i32_1 = arith.constant 0 : i32
    return %c0_i32, %c0_i32_0 : i32, i32
  }
  func.func @transform_5(%arg0: i32, %arg1: i32) -> (i32, i32) {
    %c0_i32 = arith.constant 0 : i32
    %c0_i32_0 = arith.constant 0 : i32
    %c0_i32_1 = arith.constant 0 : i32
    return %c0_i32, %c0_i32_0 : i32, i32
  }
  func.func @transform_6(%arg0: i32, %arg1: i32) -> (i32, i32) {
    %c0_i32 = arith.constant 0 : i32
    %c0_i32_0 = arith.constant 0 : i32
    %c0_i32_1 = arith.constant 0 : i32
    return %c0_i32, %c0_i32_0 : i32, i32
  }
  func.func @transform_7(%arg0: i32, %arg1: i32) -> (i32, i32) {
    %c0_i32 = arith.constant 0 : i32
    %c0_i32_0 = arith.constant 0 : i32
    %c0_i32_1 = arith.constant 0 : i32
    return %c0_i32, %c0_i32_0 : i32, i32
  }
  func.func @transform_8(%arg0: i32, %arg1: i32) -> (i32, i32) {
    %c0_i32 = arith.constant 0 : i32
    %c0_i32_0 = arith.constant 0 : i32
    %c0_i32_1 = arith.constant 0 : i32
    return %c0_i32, %c0_i32_0 : i32, i32
  }
  func.func @transform_9(%arg0: i32, %arg1: i32) -> (i32, i32) {
    %c0_i32 = arith.constant 0 : i32
    %c0_i32_0 = arith.constant 0 : i32
    return %arg1, %c0_i32 : i32, i32
  }
  func.func @transform_10(%arg0: i32, %arg1: i32) -> (i32, i32) {
    %c0_i32 = arith.constant 0 : i32
    %c0_i32_0 = arith.constant 0 : i32
    return %arg1, %c0_i32 : i32, i32
  }
  func.func @transform_11(%arg0: i32, %arg1: i32) -> (i32, i32, i32) {
    %c0_i32 = arith.constant 0 : i32
    %c0_i32_0 = arith.constant 0 : i32
    return %arg0, %arg1, %c0_i32 : i32, i32, i32
  }
  func.func @transform_12(%arg0: i32, %arg1: i32) -> (i32, i32, i32) {
    %c0_i32 = arith.constant 0 : i32
    %c0_i32_0 = arith.constant 0 : i32
    return %arg0, %arg1, %c0_i32 : i32, i32, i32
  }
  func.func @transform_13(%arg0: i32, %arg1: i32) -> (i32, i32, i32) {
    %c0_i32 = arith.constant 0 : i32
    %c0_i32_0 = arith.constant 0 : i32
    return %arg0, %arg1, %c0_i32 : i32, i32, i32
  }
  func.func @transform_14(%arg0: i32, %arg1: i32) -> (i32, i32, i32) {
    %c0_i32 = arith.constant 0 : i32
    %c0_i32_0 = arith.constant 0 : i32
    return %arg0, %arg1, %c0_i32 : i32, i32, i32
  }
}

</mosaic_0001>

<llo_original>
// kernel: tpu_custom_call.1
$region0: #{tpu_custom_call.1}
  #allocation0 [shape = 'u32[]', space=smem, size = 0x4, offset = 0x4, fixed_abs, tag = 'smem constant byte address 0x4 - core index']
  #allocation1 [shape = 'u32[144,128]{1,0:T(1,128)}', space=vmem, size = 0x12000, scoped, tag = 'internal scratch']
  %s0 = inlined_call_operand.hbm [shape: f32[2,8,32], index: 0, kind: input, shape index: {}]
  %s1 = inlined_call_operand.hbm [shape: f32[1,32], index: 1, kind: input, shape index: {}]
  %s2 = inlined_call_operand.hbm [shape: f32[1,32], index: 2, kind: input, shape index: {}]
  %s3 = inlined_call_operand.hbm [shape: bf16[32,32], index: 3, kind: input, shape index: {}]
  %s4 = inlined_call_operand.hbm [shape: f32[1,32], index: 4, kind: input, shape index: {}]
  %s5 = inlined_call_operand.hbm [shape: bf16[32,32], index: 5, kind: input, shape index: {}]
  %s6 = inlined_call_operand.hbm [shape: f32[1,32], index: 6, kind: input, shape index: {}]
  %s7 = inlined_call_operand.hbm [shape: bf16[32,32], index: 7, kind: input, shape index: {}]
  %s8 = inlined_call_operand.hbm [shape: f32[1,32], index: 8, kind: input, shape index: {}]
  %s9 = inlined_call_operand.vmem [shape: f32[8,32], index: 9, kind: input, shape index: {}]
  %s10 = inlined_call_operand.vmem [shape: f32[8,32], index: 10, kind: input, shape index: {}]
  %s11 = inlined_call_operand.hbm [shape: f32[2,8,32], index: 11, kind: output, shape index: {0}]
  %s12 = inlined_call_operand.hbm [shape: bf16[2,8,32], index: 12, kind: output, shape index: {1}]
  %s13 = inlined_call_operand.hbm [shape: bf16[2,8,32], index: 13, kind: output, shape index: {2}]
  %s14 = inlined_call_operand.hbm [shape: bf16[2,8,32], index: 14, kind: output, shape index: {3}]
  %15 = xla_tuple %s11, %s12, %s13, %s14
  %s16 = sld [smem:[#allocation0]]
  $region137: #{tpu_custom_call.1} parent=0
    _
  %s18 = ssub.s32 1, %s16
  %s19 = scalar_select 0, %s18, %s16
  $region1: #{tpu_custom_call.1} parent=0
    #allocation2 [shape = 'u8[8192]{0}', space=vmem, size = 0x2000, scoped, tag = 'input window, operand 0']
    #allocation3 [shape = 's32[2]{0}', space=sflag, size = 0x8, scoped, tag = 'scoped memory for tpu_custom_call.1']
    #allocation4 [shape = 's32[2]{0}', space=sflag, size = 0x8, scoped, tag = 'scoped memory for tpu_custom_call.1']
    #allocation5 [shape = 'u8[512]{0}', space=vmem, size = 0x400, scoped, tag = 'input window, operand 1, single buffered']
    #allocation6 [shape = 's32[1]{0}', space=sflag, size = 0x4, scoped, tag = 'scoped memory for tpu_custom_call.1']
    #allocation7 [shape = 'u8[512]{0}', space=vmem, size = 0x400, scoped, tag = 'input window, operand 2, single buffered']
    #allocation8 [shape = 'u8[8192]{0}', space=vmem, size = 0x2000, scoped, tag = 'input window, operand 3, single buffered']
    #allocation9 [shape = 's32[1]{0}', space=sflag, size = 0x4, scoped, tag = 'scoped memory for tpu_custom_call.1']
    #allocation10 [shape = 'u8[512]{0}', space=vmem, size = 0x400, scoped, tag = 'input window, operand 4, single buffered']
    #allocation11 [shape = 'u8[8192]{0}', space=vmem, size = 0x2000, scoped, tag = 'input window, operand 5, single buffered']
    #allocation12 [shape = 's32[1]{0}', space=sflag, size = 0x4, scoped, tag = 'scoped memory for tpu_custom_call.1']
    #allocation13 [shape = 'u8[512]{0}', space=vmem, size = 0x400, scoped, tag = 'input window, operand 6, single buffered']
    #allocation14 [shape = 'u8[8192]{0}', space=vmem, size = 0x2000, scoped, tag = 'input window, operand 7, single buffered']
    #allocation15 [shape = 's32[1]{0}', space=sflag, size = 0x4, scoped, tag = 'scoped memory for tpu_custom_call.1']
    #allocation16 [shape = 'u8[512]{0}', space=vmem, size = 0x400, scoped, tag = 'input window, operand 8, single buffered']
    #allocation17 [shape = 'u8[8192]{0}', space=vmem, size = 0x2000, scoped, tag = 'output window, operand 0']
    #allocation18 [shape = 'u8[4096]{0}', space=vmem, size = 0x1000, scoped, tag = 'output window, operand 1']
    #allocation19 [shape = 's32[2]{0}', space=sflag, size = 0x8, scoped, tag = 'scoped memory for tpu_custom_call.1']
    #allocation20 [shape = 'u8[4096]{0}', space=vmem, size = 0x1000, scoped, tag = 'output window, operand 2']
    #allocation21 [shape = 'u8[4096]{0}', space=vmem, size = 0x1000, scoped, tag = 'output window, operand 3']
    #allocation22 [shape = 's32[2]{0}', space=sflag, size = 0x8, scoped, tag = 'scoped memory for tpu_custom_call.1']
    %20 = vsyncpa [#allocation3], 0
    %s21 = scalar_lea.sflag [#allocation3], 1
    %22 = vsyncpa %s21, 0
    %23 = vsyncpa [#allocation6], 0
    %24 = vsyncpa [#allocation9], 0
    %25 = vsyncpa [#allocation12], 0
    %26 = vsyncpa [#allocation15], 0
    %27 = vsyncpa [#allocation4], 0
    %s28 = scalar_lea.sflag [#allocation4], 1
    %29 = vsyncpa %s28, 0
    %30 = vsyncpa [#allocation19], 0
    %s31 = scalar_lea.sflag [#allocation19], 1
    %32 = vsyncpa %s31, 0
    %33 = vsyncpa [#allocation22], 0
    %s34 = scalar_lea.sflag [#allocation22], 1
    %35 = vsyncpa %s34, 0
    loop: start=0, step=1, limit=4
    $region2: #{tpu_custom_call.1} parent=1 // loop_pre_header
      _
    $region3: #{tpu_custom_call.1} parent=1 // loop_header
      %s37 = sphi 0, %s41
      %p38 = scmp.ge.s32.totalorder %s37, 4
      %s44 = sphi 0, %s56
      %s45 = sphi 0, %s52
      %s46 = sphi 0, %s44
      %s47 = sphi 0, %s45
      %s48 = sphi 0, %s46
      %s49 = sphi 0, %s47
      %s61 = sphi 0, %s63
      %s64 = sphi 0, %s61
      %s65 = sphi 0, %s64
      %s81 = sphi 0, %s65
      %s85 = sphi 0, %s85
      %s87 = sphi 0, %s85
      %s88 = sphi 0, %s87
      %s102 = sphi 0, %s88
      %s106 = sphi 0, %s106
      %s108 = sphi 0, %s106
      %s109 = sphi 0, %s108
      %s123 = sphi 0, %s109
      %s127 = sphi 0, %s127
      %s129 = sphi 0, %s127
      %s130 = sphi 0, %s129
      %s144 = sphi 0, %s130
      %s148 = sphi 0, %s148
      %s150 = sphi 0, %s148
      %s151 = sphi 0, %s150
      %s165 = sphi 0, %s151
      %s169 = sphi 0, %s169
      %s171 = sphi 0, %s169
      %s172 = sphi 0, %s171
      %s186 = sphi 0, %s172
      %s190 = sphi 0, %s190
      %s192 = sphi 0, %s190
      %s193 = sphi 0, %s192
      %s207 = sphi 0, %s193
      %s211 = sphi 0, %s211
      %s213 = sphi 0, %s211
      %s214 = sphi 0, %s213
      %s228 = sphi 0, %s214
      %s232 = sphi 0, %s232
      %s234 = sphi 0, %s232
      %s235 = sphi 0, %s234
      %s249 = sphi 0, %s235
      %s255 = sphi 0, %s257
      %s258 = sphi 0, %s255
      %s259 = sphi 0, %s258
      %s275 = sphi 0, %s259
      %s281 = sphi 0, %s283
      %s284 = sphi 0, %s281
      %s285 = sphi 0, %s284
      %s301 = sphi 0, %s285
      %s309 = sphi 0, %s311
      %s312 = sphi 0, %s309
      %s313 = sphi 0, %s312
      %s329 = sphi 0, %s313
      %s337 = sphi 0, %s339
      %s340 = sphi 0, %s337
      %s341 = sphi 0, %s340
      %s357 = sphi 0, %s341
      %s365 = sphi 0, %s367
      %s368 = sphi 0, %s365
      %s369 = sphi 0, %s368
      %s385 = sphi 0, %s369
      %s393 = sphi 0, %s395
      %s396 = sphi 0, %s393
      %s397 = sphi 0, %s396
      %s413 = sphi 0, %s397
    $region4: #{tpu_custom_call.1} parent=1 // loop_header_branch
      %40 = sbr.rel (%p38) target = $region8
    $region5: #{tpu_custom_call.1} parent=1 // loop_body
      %s42 = ssub.s32 %s37, 1
      %s43 = ssub.s32 %s37, 2
      %s50 = sadd.s32 1, %s45
      %p51 = scmp.ge.s32.totalorder %s50, 1
      %s52 = scalar_select %p51, 0, %s50
      %s53 = sadd.s32 1, %s44
      %s54 = scalar_select %p51, %s53, %s44
      %p55 = scmp.ge.s32.totalorder %s54, 2
      %s56 = scalar_select %p55, 0, %s54
      %s57 = ssub.s32 %s44, %s56
      %s58 = ssub.s32 %s45, %s52
      %s59 = sor.u32 %s57, %s58
      %p60 = scmp.eq.s32.totalorder %s59, 0
      %s62 = sadd.s32 %s61, 1
      %s63 = scalar_select %p60, %s61, %s62
      %p66 = pneg %p60
      %p67 = scmp.eq.s32.totalorder %s37, 1
      %p68 = por %p66, %p67
      %p69 = scmp.ne.s32.totalorder %s61, %s64
      %p70 = scmp.eq.s32.totalorder %s37, 0
      %p71 = por %p69, %p70
      %p72 = scmp.ne.s32.totalorder %s61, %s64
      %p73 = scmp.eq.s32.totalorder %s42, 1
      %p74 = por %p72, %p73
      %p75 = scmp.ne.s32.totalorder %s64, %s65
      %p76 = scmp.eq.s32.totalorder %s42, 0
      %p77 = por %p75, %p76
      %p78 = scmp.ne.s32.totalorder %s64, %s65
      %p79 = scmp.eq.s32.totalorder %s43, 1
      %p80 = por %p78, %p79
      %p82 = scmp.ne.s32.totalorder %s65, %s81
      %p83 = scmp.eq.s32.totalorder %s43, 0
      %p84 = por %p82, %p83
      %s86 = sadd.s32 %s85, 1
      %p89 = scmp.eq.s32.totalorder %s37, 1
      %p90 = scmp.ne.s32.totalorder %s85, %s87
      %p91 = scmp.eq.s32.totalorder %s37, 0
      %p92 = por %p90, %p91
      %p93 = scmp.ne.s32.totalorder %s85, %s87
      %p94 = scmp.eq.s32.totalorder %s42, 1
      %p95 = por %p93, %p94
      %p96 = scmp.ne.s32.totalorder %s87, %s88
      %p97 = scmp.eq.s32.totalorder %s42, 0
      %p98 = por %p96, %p97
      %p99 = scmp.ne.s32.totalorder %s87, %s88
      %p100 = scmp.eq.s32.totalorder %s43, 1
      %p101 = por %p99, %p100
      %p103 = scmp.ne.s32.totalorder %s88, %s102
      %p104 = scmp.eq.s32.totalorder %s43, 0
      %p105 = por %p103, %p104
      %s107 = sadd.s32 %s106, 1
      %p110 = scmp.eq.s32.totalorder %s37, 1
      %p111 = scmp.ne.s32.totalorder %s106, %s108
      %p112 = scmp.eq.s32.totalorder %s37, 0
      %p113 = por %p111, %p112
      %p114 = scmp.ne.s32.totalorder %s106, %s108
      %p115 = scmp.eq.s32.totalorder %s42, 1
      %p116 = por %p114, %p115
      %p117 = scmp.ne.s32.totalorder %s108, %s109
      %p118 = scmp.eq.s32.totalorder %s42, 0
      %p119 = por %p117, %p118
      %p120 = scmp.ne.s32.totalorder %s108, %s109
      %p121 = scmp.eq.s32.totalorder %s43, 1
      %p122 = por %p120, %p121
      %p124 = scmp.ne.s32.totalorder %s109, %s123
      %p125 = scmp.eq.s32.totalorder %s43, 0
      %p126 = por %p124, %p125
      %s128 = sadd.s32 %s127, 1
      %p131 = scmp.eq.s32.totalorder %s37, 1
      %p132 = scmp.ne.s32.totalorder %s127, %s129
      %p133 = scmp.eq.s32.totalorder %s37, 0
      %p134 = por %p132, %p133
      %p135 = scmp.ne.s32.totalorder %s127, %s129
      %p136 = scmp.eq.s32.totalorder %s42, 1
      %p137 = por %p135, %p136
      %p138 = scmp.ne.s32.totalorder %s129, %s130
      %p139 = scmp.eq.s32.totalorder %s42, 0
      %p140 = por %p138, %p139
      %p141 = scmp.ne.s32.totalorder %s129, %s130
      %p142 = scmp.eq.s32.totalorder %s43, 1
      %p143 = por %p141, %p142
      %p145 = scmp.ne.s32.totalorder %s130, %s144
      %p146 = scmp.eq.s32.totalorder %s43, 0
      %p147 = por %p145, %p146
      %s149 = sadd.s32 %s148, 1
      %p152 = scmp.eq.s32.totalorder %s37, 1
      %p153 = scmp.ne.s32.totalorder %s148, %s150
      %p154 = scmp.eq.s32.totalorder %s37, 0
      %p155 = por %p153, %p154
      %p156 = scmp.ne.s32.totalorder %s148, %s150
      %p157 = scmp.eq.s32.totalorder %s42, 1
      %p158 = por %p156, %p157
      %p159 = scmp.ne.s32.totalorder %s150, %s151
      %p160 = scmp.eq.s32.totalorder %s42, 0
      %p161 = por %p159, %p160
      %p162 = scmp.ne.s32.totalorder %s150, %s151
      %p163 = scmp.eq.s32.totalorder %s43, 1
      %p164 = por %p162, %p163
      %p166 = scmp.ne.s32.totalorder %s151, %s165
      %p167 = scmp.eq.s32.totalorder %s43, 0
      %p168 = por %p166, %p167
      %s170 = sadd.s32 %s169, 1
      %p173 = scmp.eq.s32.totalorder %s37, 1
      %p174 = scmp.ne.s32.totalorder %s169, %s171
      %p175 = scmp.eq.s32.totalorder %s37, 0
      %p176 = por %p174, %p175
      %p177 = scmp.ne.s32.totalorder %s169, %s171
      %p178 = scmp.eq.s32.totalorder %s42, 1
      %p179 = por %p177, %p178
      %p180 = scmp.ne.s32.totalorder %s171, %s172
      %p181 = scmp.eq.s32.totalorder %s42, 0
      %p182 = por %p180, %p181
      %p183 = scmp.ne.s32.totalorder %s171, %s172
      %p184 = scmp.eq.s32.totalorder %s43, 1
      %p185 = por %p183, %p184
      %p187 = scmp.ne.s32.totalorder %s172, %s186
      %p188 = scmp.eq.s32.totalorder %s43, 0
      %p189 = por %p187, %p188
      %s191 = sadd.s32 %s190, 1
      %p194 = scmp.eq.s32.totalorder %s37, 1
      %p195 = scmp.ne.s32.totalorder %s190, %s192
      %p196 = scmp.eq.s32.totalorder %s37, 0
      %p197 = por %p195, %p196
      %p198 = scmp.ne.s32.totalorder %s190, %s192
      %p199 = scmp.eq.s32.totalorder %s42, 1
      %p200 = por %p198, %p199
      %p201 = scmp.ne.s32.totalorder %s192, %s193
      %p202 = scmp.eq.s32.totalorder %s42, 0
      %p203 = por %p201, %p202
      %p204 = scmp.ne.s32.totalorder %s192, %s193
      %p205 = scmp.eq.s32.totalorder %s43, 1
      %p206 = por %p204, %p205
      %p208 = scmp.ne.s32.totalorder %s193, %s207
      %p209 = scmp.eq.s32.totalorder %s43, 0
      %p210 = por %p208, %p209
      %s212 = sadd.s32 %s211, 1
      %p215 = scmp.eq.s32.totalorder %s37, 1
      %p216 = scmp.ne.s32.totalorder %s211, %s213
      %p217 = scmp.eq.s32.totalorder %s37, 0
      %p218 = por %p216, %p217
      %p219 = scmp.ne.s32.totalorder %s211, %s213
      %p220 = scmp.eq.s32.totalorder %s42, 1
      %p221 = por %p219, %p220
      %p222 = scmp.ne.s32.totalorder %s213, %s214
      %p223 = scmp.eq.s32.totalorder %s42, 0
      %p224 = por %p222, %p223
      %p225 = scmp.ne.s32.totalorder %s213, %s214
      %p226 = scmp.eq.s32.totalorder %s43, 1
      %p227 = por %p225, %p226
      %p229 = scmp.ne.s32.totalorder %s214, %s228
      %p230 = scmp.eq.s32.totalorder %s43, 0
      %p231 = por %p229, %p230
      %s233 = sadd.s32 %s232, 1
      %p236 = scmp.eq.s32.totalorder %s37, 1
      %p237 = scmp.ne.s32.totalorder %s232, %s234
      %p238 = scmp.eq.s32.totalorder %s37, 0
      %p239 = por %p237, %p238
      %p240 = scmp.ne.s32.totalorder %s232, %s234
      %p241 = scmp.eq.s32.totalorder %s42, 1
      %p242 = por %p240, %p241
      %p243 = scmp.ne.s32.totalorder %s234, %s235
      %p244 = scmp.eq.s32.totalorder %s42, 0
      %p245 = por %p243, %p244
      %p246 = scmp.ne.s32.totalorder %s234, %s235
      %p247 = scmp.eq.s32.totalorder %s43, 1
      %p248 = por %p246, %p247
      %p250 = scmp.ne.s32.totalorder %s235, %s249
      %p251 = scmp.eq.s32.totalorder %s43, 0
      %p252 = por %p250, %p251
      %s253 = ssub.s32 %s45, %s52
      %p254 = scmp.eq.s32.totalorder %s253, 0
      %s256 = sadd.s32 %s255, 1
      %s257 = scalar_select %p254, %s255, %s256
      %p260 = pneg %p254
      %p261 = scmp.eq.s32.totalorder %s37, 1
      %p262 = por %p260, %p261
      %p263 = scmp.ne.s32.totalorder %s255, %s258
      %p264 = scmp.eq.s32.totalorder %s37, 0
      %p265 = por %p263, %p264
      %p266 = scmp.ne.s32.totalorder %s255, %s258
      %p267 = scmp.eq.s32.totalorder %s42, 1
      %p268 = por %p266, %p267
      %p269 = scmp.ne.s32.totalorder %s258, %s259
      %p270 = scmp.eq.s32.totalorder %s42, 0
      %p271 = por %p269, %p270
      %p272 = scmp.ne.s32.totalorder %s258, %s259
      %p273 = scmp.eq.s32.totalorder %s43, 1
      %p274 = por %p272, %p273
      %p276 = scmp.ne.s32.totalorder %s259, %s275
      %p277 = scmp.eq.s32.totalorder %s43, 0
      %p278 = por %p276, %p277
      %s279 = ssub.s32 %s45, %s52
      %p280 = scmp.eq.s32.totalorder %s279, 0
      %s282 = sadd.s32 %s281, 1
      %s283 = scalar_select %p280, %s281, %s282
      %p286 = pneg %p280
      %p287 = scmp.eq.s32.totalorder %s37, 1
      %p288 = por %p286, %p287
      %p289 = scmp.ne.s32.totalorder %s281, %s284
      %p290 = scmp.eq.s32.totalorder %s37, 0
      %p291 = por %p289, %p290
      %p292 = scmp.ne.s32.totalorder %s281, %s284
      %p293 = scmp.eq.s32.totalorder %s42, 1
      %p294 = por %p292, %p293
      %p295 = scmp.ne.s32.totalorder %s284, %s285
      %p296 = scmp.eq.s32.totalorder %s42, 0
      %p297 = por %p295, %p296
      %p298 = scmp.ne.s32.totalorder %s284, %s285
      %p299 = scmp.eq.s32.totalorder %s43, 1
      %p300 = por %p298, %p299
      %p302 = scmp.ne.s32.totalorder %s285, %s301
      %p303 = scmp.eq.s32.totalorder %s43, 0
      %p304 = por %p302, %p303
      %s305 = ssub.s32 %s44, %s56
      %s306 = ssub.s32 %s45, %s52
      %s307 = sor.u32 %s305, %s306
      %p308 = scmp.eq.s32.totalorder %s307, 0
      %s310 = sadd.s32 %s309, 1
      %s311 = scalar_select %p308, %s309, %s310
      %p314 = pneg %p308
      %p315 = scmp.eq.s32.totalorder %s37, 1
      %p316 = por %p314, %p315
      %p317 = scmp.ne.s32.totalorder %s309, %s312
      %p318 = scmp.eq.s32.totalorder %s37, 0
      %p319 = por %p317, %p318
      %p320 = scmp.ne.s32.totalorder %s309, %s312
      %p321 = scmp.eq.s32.totalorder %s42, 1
      %p322 = por %p320, %p321
      %p323 = scmp.ne.s32.totalorder %s312, %s313
      %p324 = scmp.eq.s32.totalorder %s42, 0
      %p325 = por %p323, %p324
      %p326 = scmp.ne.s32.totalorder %s312, %s313
      %p327 = scmp.eq.s32.totalorder %s43, 1
      %p328 = por %p326, %p327
      %p330 = scmp.ne.s32.totalorder %s313, %s329
      %p331 = scmp.eq.s32.totalorder %s43, 0
      %p332 = por %p330, %p331
      %s333 = ssub.s32 %s44, %s56
      %s334 = ssub.s32 %s45, %s52
      %s335 = sor.u32 %s333, %s334
      %p336 = scmp.eq.s32.totalorder %s335, 0
      %s338 = sadd.s32 %s337, 1
      %s339 = scalar_select %p336, %s337, %s338
      %p342 = pneg %p336
      %p343 = scmp.eq.s32.totalorder %s37, 1
      %p344 = por %p342, %p343
      %p345 = scmp.ne.s32.totalorder %s337, %s340
      %p346 = scmp.eq.s32.totalorder %s37, 0
      %p347 = por %p345, %p346
      %p348 = scmp.ne.s32.totalorder %s337, %s340
      %p349 = scmp.eq.s32.totalorder %s42, 1
      %p350 = por %p348, %p349
      %p351 = scmp.ne.s32.totalorder %s340, %s341
      %p352 = scmp.eq.s32.totalorder %s42, 0
      %p353 = por %p351, %p352
      %p354 = scmp.ne.s32.totalorder %s340, %s341
      %p355 = scmp.eq.s32.totalorder %s43, 1
      %p356 = por %p354, %p355
      %p358 = scmp.ne.s32.totalorder %s341, %s357
      %p359 = scmp.eq.s32.totalorder %s43, 0
      %p360 = por %p358, %p359
      %s361 = ssub.s32 %s44, %s56
      %s362 = ssub.s32 %s45, %s52
      %s363 = sor.u32 %s361, %s362
      %p364 = scmp.eq.s32.totalorder %s363, 0
      %s366 = sadd.s32 %s365, 1
      %s367 = scalar_select %p364, %s365, %s366
      %p370 = pneg %p364
      %p371 = scmp.eq.s32.totalorder %s37, 1
      %p372 = por %p370, %p371
      %p373 = scmp.ne.s32.totalorder %s365, %s368
      %p374 = scmp.eq.s32.totalorder %s37, 0
      %p375 = por %p373, %p374
      %p376 = scmp.ne.s32.totalorder %s365, %s368
      %p377 = scmp.eq.s32.totalorder %s42, 1
      %p378 = por %p376, %p377
      %p379 = scmp.ne.s32.totalorder %s368, %s369
      %p380 = scmp.eq.s32.totalorder %s42, 0
      %p381 = por %p379, %p380
      %p382 = scmp.ne.s32.totalorder %s368, %s369
      %p383 = scmp.eq.s32.totalorder %s43, 1
      %p384 = por %p382, %p383
      %p386 = scmp.ne.s32.totalorder %s369, %s385
      %p387 = scmp.eq.s32.totalorder %s43, 0
      %p388 = por %p386, %p387
      %s389 = ssub.s32 %s44, %s56
      %s390 = ssub.s32 %s45, %s52
      %s391 = sor.u32 %s389, %s390
      %p392 = scmp.eq.s32.totalorder %s391, 0
      %s394 = sadd.s32 %s393, 1
      %s395 = scalar_select %p392, %s393, %s394
      %p398 = pneg %p392
      %p399 = scmp.eq.s32.totalorder %s37, 1
      %p400 = por %p398, %p399
      %p401 = scmp.ne.s32.totalorder %s393, %s396
      %p402 = scmp.eq.s32.totalorder %s37, 0
      %p403 = por %p401, %p402
      %p404 = scmp.ne.s32.totalorder %s393, %s396
      %p405 = scmp.eq.s32.totalorder %s42, 1
      %p406 = por %p404, %p405
      %p407 = scmp.ne.s32.totalorder %s396, %s397
      %p408 = scmp.eq.s32.totalorder %s42, 0
      %p409 = por %p407, %p408
      %p410 = scmp.ne.s32.totalorder %s396, %s397
      %p411 = scmp.eq.s32.totalorder %s43, 1
      %p412 = por %p410, %p411
      %p414 = scmp.ne.s32.totalorder %s397, %s413
      %p415 = scmp.eq.s32.totalorder %s43, 0
      %p416 = por %p414, %p415
      %p417 = scmp.le.s32.totalorder 1, %s37
      %p418 = scmp.lt.s32.totalorder %s37, 3
      %p419 = pnand %p417, %p418
      %p420 = pneg %p419
      // Predicated region
      $region9: #{tpu_custom_call.1} parent=5 // pred_check
        _
      $region10: #{tpu_custom_call.1} parent=5 // pred_check_branch
        %422 = sbr.rel (%p419) target = $region12
      $region11: #{tpu_custom_call.1} parent=5 // pred_region
        %s423 = ssub.s32 %s37, 1
        // Predicated region
        $region13: #{tpu_custom_call.1} parent=11 // pred_check
          %p424 = pneg %p98
        $region14: #{tpu_custom_call.1} parent=11 // pred_check_branch
          %426 = sbr.rel (%p424) target = $region16
        $region15: #{tpu_custom_call.1} parent=11 // pred_region
          %s428 = ssub.s32 16, 16
          %429 = vsyncadd [#allocation6], %s428
          %s431 = sshll.u32 [#allocation5], 4
          %s432 = int_to_ptr.vmem [resolvable:$true] %s431
          %434 = dma.hbm_to_vmem [thread:$0]  %s1, 16, %s432, [#allocation6]
        $region16: #{tpu_custom_call.1} parent=11 // pred_fallthru
          _
        // Predicated region
        $region17: #{tpu_custom_call.1} parent=11 // pred_check
          %p435 = pneg %p119
        $region18: #{tpu_custom_call.1} parent=11 // pred_check_branch
          %437 = sbr.rel (%p435) target = $region20
        $region19: #{tpu_custom_call.1} parent=11 // pred_region
          %s439 = ssub.s32 16, 16
          %440 = vsyncadd [#allocation6], %s439
          %s442 = sshll.u32 [#allocation7], 4
          %s443 = int_to_ptr.vmem [resolvable:$true] %s442
          %445 = dma.hbm_to_vmem [thread:$0]  %s2, 16, %s443, [#allocation6]
        $region20: #{tpu_custom_call.1} parent=11 // pred_fallthru
          _
        // Predicated region
        $region21: #{tpu_custom_call.1} parent=11 // pred_check
          %p446 = pneg %p140
        $region22: #{tpu_custom_call.1} parent=11 // pred_check_branch
          %448 = sbr.rel (%p446) target = $region24
        $region23: #{tpu_custom_call.1} parent=11 // pred_region
          %s450 = ssub.s32 256, 256
          %451 = vsyncadd [#allocation9], %s450
          %s452 = sshll.u32 [#allocation8], 4
          %s453 = int_to_ptr.vmem [resolvable:$true] %s452
          %458 = dma.hbm_to_vmem [thread:$0]  %s3, 256, %s453, [#allocation9], 64, 64, 4
        $region24: #{tpu_custom_call.1} parent=11 // pred_fallthru
          _
        // Predicated region
        $region25: #{tpu_custom_call.1} parent=11 // pred_check
          %p459 = pneg %p161
        $region26: #{tpu_custom_call.1} parent=11 // pred_check_branch
          %461 = sbr.rel (%p459) target = $region28
        $region27: #{tpu_custom_call.1} parent=11 // pred_region
          %s463 = ssub.s32 16, 16
          %464 = vsyncadd [#allocation9], %s463
          %s466 = sshll.u32 [#allocation10], 4
          %s467 = int_to_ptr.vmem [resolvable:$true] %s466
          %469 = dma.hbm_to_vmem [thread:$0]  %s4, 16, %s467, [#allocation9]
        $region28: #{tpu_custom_call.1} parent=11 // pred_fallthru
          _
        // Predicated region
        $region29: #{tpu_custom_call.1} parent=11 // pred_check
          %p470 = pneg %p182
        $region30: #{tpu_custom_call.1} parent=11 // pred_check_branch
          %472 = sbr.rel (%p470) target = $region32
        $region31: #{tpu_custom_call.1} parent=11 // pred_region
          %s474 = ssub.s32 256, 256
          %475 = vsyncadd [#allocation12], %s474
          %s476 = sshll.u32 [#allocation11], 4
          %s477 = int_to_ptr.vmem [resolvable:$true] %s476
          %482 = dma.hbm_to_vmem [thread:$0]  %s5, 256, %s477, [#allocation12], 64, 64, 4
        $region32: #{tpu_custom_call.1} parent=11 // pred_fallthru
          _
        // Predicated region
        $region33: #{tpu_custom_call.1} parent=11 // pred_check
          %p483 = pneg %p203
        $region34: #{tpu_custom_call.1} parent=11 // pred_check_branch
          %485 = sbr.rel (%p483) target = $region36
        $region35: #{tpu_custom_call.1} parent=11 // pred_region
          %s487 = ssub.s32 16, 16
          %488 = vsyncadd [#allocation12], %s487
          %s490 = sshll.u32 [#allocation13], 4
          %s491 = int_to_ptr.vmem [resolvable:$true] %s490
          %493 = dma.hbm_to_vmem [thread:$0]  %s6, 16, %s491, [#allocation12]
        $region36: #{tpu_custom_call.1} parent=11 // pred_fallthru
          _
        // Predicated region
        $region37: #{tpu_custom_call.1} parent=11 // pred_check
          %p494 = pneg %p224
        $region38: #{tpu_custom_call.1} parent=11 // pred_check_branch
          %496 = sbr.rel (%p494) target = $region40
        $region39: #{tpu_custom_call.1} parent=11 // pred_region
          %s498 = ssub.s32 256, 256
          %499 = vsyncadd [#allocation15], %s498
          %s500 = sshll.u32 [#allocation14], 4
          %s501 = int_to_ptr.vmem [resolvable:$true] %s500
          %506 = dma.hbm_to_vmem [thread:$0]  %s7, 256, %s501, [#allocation15], 64, 64, 4
        $region40: #{tpu_custom_call.1} parent=11 // pred_fallthru
          _
        // Predicated region
        $region41: #{tpu_custom_call.1} parent=11 // pred_check
          %p507 = pneg %p245
        $region42: #{tpu_custom_call.1} parent=11 // pred_check_branch
          %509 = sbr.rel (%p507) target = $region44
        $region43: #{tpu_custom_call.1} parent=11 // pred_region
          %s511 = ssub.s32 16, 16
          %512 = vsyncadd [#allocation15], %s511
          %s514 = sshll.u32 [#allocation16], 4
          %s515 = int_to_ptr.vmem [resolvable:$true] %s514
          %517 = dma.hbm_to_vmem [thread:$0]  %s8, 16, %s515, [#allocation15]
        $region44: #{tpu_custom_call.1} parent=11 // pred_fallthru
          _
        // Predicated region
        $region45: #{tpu_custom_call.1} parent=11 // pred_check
          %p518 = pneg %p271
        $region46: #{tpu_custom_call.1} parent=11 // pred_check_branch
          %520 = sbr.rel (%p518) target = $region48
        $region47: #{tpu_custom_call.1} parent=11 // pred_region
          %p521 = scmp.lt.s32.totalorder %s47, 0
          %s522 = scalar_select %p521, %s47, 0
          %s523 = smul.addr %s522, 8
          %s524 = scalar_lea.vmem %s9, %s523
        $region48: #{tpu_custom_call.1} parent=11 // pred_fallthru
          _
        // Predicated region
        $region49: #{tpu_custom_call.1} parent=11 // pred_check
          %p525 = pneg %p297
        $region50: #{tpu_custom_call.1} parent=11 // pred_check_branch
          %527 = sbr.rel (%p525) target = $region52
        $region51: #{tpu_custom_call.1} parent=11 // pred_region
          %p528 = scmp.lt.s32.totalorder %s47, 0
          %s529 = scalar_select %p528, %s47, 0
          %s530 = smul.addr %s529, 8
          %s531 = scalar_lea.vmem %s10, %s530
        $region52: #{tpu_custom_call.1} parent=11 // pred_fallthru
          _
      $region12: #{tpu_custom_call.1} parent=5 // pred_fallthru
        _
      %p532 = scmp.lt.s32.totalorder %s37, 2
      // Predicated region
      $region53: #{tpu_custom_call.1} parent=5 // pred_check
        %p533 = pneg %p532
      $region54: #{tpu_custom_call.1} parent=5 // pred_check_branch
        %535 = sbr.rel (%p533) target = $region56
      $region55: #{tpu_custom_call.1} parent=5 // pred_region
        // Predicated region
        $region57: #{tpu_custom_call.1} parent=55 // pred_check
          %p536 = pneg %p71
        $region58: #{tpu_custom_call.1} parent=55 // pred_check_branch
          %538 = sbr.rel (%p536) target = $region60
        $region59: #{tpu_custom_call.1} parent=55 // pred_region
          %s539 = sand.u32 %s61, 1
          %s540 = scalar_lea.sflag [#allocation3], %s539
          %s541 = sand.u32 %s61, 1
          %s542 = smul.addr %s541, 8
          %s543 = scalar_lea.vmem [#allocation2], %s542
          %s545 = ssub.s32 128, 128
          %546 = vsyncadd %s540, %s545
          %s547 = sadd.s32 %s45, %s44
          %s548 = smul.addr %s547, 128
          %s549 = scalar_lea.hbm %s0, %s548
          %s551 = sshll.u32 %s543, 4
          %s552 = int_to_ptr.vmem [resolvable:$true] %s551
          %554 = dma.hbm_to_vmem [thread:$0]  %s549, 128, %s552, %s540
        $region60: #{tpu_custom_call.1} parent=55 // pred_fallthru
          _
      $region56: #{tpu_custom_call.1} parent=5 // pred_fallthru
        _
      %p555 = scmp.le.s32.totalorder 1, %s37
      %p556 = scmp.lt.s32.totalorder %s37, 3
      %p557 = pnand %p555, %p556
      %p558 = pneg %p557
      // Predicated region
      $region61: #{tpu_custom_call.1} parent=5 // pred_check
        _
      $region62: #{tpu_custom_call.1} parent=5 // pred_check_branch
        %560 = sbr.rel (%p557) target = $region64
      $region63: #{tpu_custom_call.1} parent=5 // pred_region
        %s561 = ssub.s32 %s37, 1
        %s562 = sand.u32 %s64, 1
        %s563 = scalar_lea.sflag [#allocation3], %s562
        %s564 = sand.u32 %s64, 1
        %s565 = smul.addr %s564, 8
        %s566 = scalar_lea.vmem [#allocation2], %s565
        // Predicated region
        $region65: #{tpu_custom_call.1} parent=63 // pred_check
          %p567 = pneg %p77
        $region66: #{tpu_custom_call.1} parent=63 // pred_check_branch
          %569 = sbr.rel (%p567) target = $region68
        $region67: #{tpu_custom_call.1} parent=63 // pred_region
          %570 = dma.done %s563, 128
        $region68: #{tpu_custom_call.1} parent=63 // pred_fallthru
          _
        // Predicated region
        $region69: #{tpu_custom_call.1} parent=63 // pred_check
          %p571 = pneg %p98
        $region70: #{tpu_custom_call.1} parent=63 // pred_check_branch
          %573 = sbr.rel (%p571) target = $region72
        $region71: #{tpu_custom_call.1} parent=63 // pred_region
          %574 = dma.done [#allocation6], 16
        $region72: #{tpu_custom_call.1} parent=63 // pred_fallthru
          _
        // Predicated region
        $region73: #{tpu_custom_call.1} parent=63 // pred_check
          %p575 = pneg %p119
        $region74: #{tpu_custom_call.1} parent=63 // pred_check_branch
          %577 = sbr.rel (%p575) target = $region76
        $region75: #{tpu_custom_call.1} parent=63 // pred_region
          %578 = dma.done [#allocation6], 16
        $region76: #{tpu_custom_call.1} parent=63 // pred_fallthru
          _
        // Predicated region
        $region77: #{tpu_custom_call.1} parent=63 // pred_check
          %p579 = pneg %p140
        $region78: #{tpu_custom_call.1} parent=63 // pred_check_branch
          %581 = sbr.rel (%p579) target = $region80
        $region79: #{tpu_custom_call.1} parent=63 // pred_region
          %582 = dma.done [#allocation9], 256
        $region80: #{tpu_custom_call.1} parent=63 // pred_fallthru
          _
        // Predicated region
        $region81: #{tpu_custom_call.1} parent=63 // pred_check
          %p583 = pneg %p161
        $region82: #{tpu_custom_call.1} parent=63 // pred_check_branch
          %585 = sbr.rel (%p583) target = $region84
        $region83: #{tpu_custom_call.1} parent=63 // pred_region
          %586 = dma.done [#allocation9], 16
        $region84: #{tpu_custom_call.1} parent=63 // pred_fallthru
          _
        // Predicated region
        $region85: #{tpu_custom_call.1} parent=63 // pred_check
          %p587 = pneg %p182
        $region86: #{tpu_custom_call.1} parent=63 // pred_check_branch
          %589 = sbr.rel (%p587) target = $region88
        $region87: #{tpu_custom_call.1} parent=63 // pred_region
          %590 = dma.done [#allocation12], 256
        $region88: #{tpu_custom_call.1} parent=63 // pred_fallthru
          _
        // Predicated region
        $region89: #{tpu_custom_call.1} parent=63 // pred_check
          %p591 = pneg %p203
        $region90: #{tpu_custom_call.1} parent=63 // pred_check_branch
          %593 = sbr.rel (%p591) target = $region92
        $region91: #{tpu_custom_call.1} parent=63 // pred_region
          %594 = dma.done [#allocation12], 16
        $region92: #{tpu_custom_call.1} parent=63 // pred_fallthru
          _
        // Predicated region
        $region93: #{tpu_custom_call.1} parent=63 // pred_check
          %p595 = pneg %p224
        $region94: #{tpu_custom_call.1} parent=63 // pred_check_branch
          %597 = sbr.rel (%p595) target = $region96
        $region95: #{tpu_custom_call.1} parent=63 // pred_region
          %598 = dma.done [#allocation15], 256
        $region96: #{tpu_custom_call.1} parent=63 // pred_fallthru
          _
        // Predicated region
        $region97: #{tpu_custom_call.1} parent=63 // pred_check
          %p599 = pneg %p245
        $region98: #{tpu_custom_call.1} parent=63 // pred_check_branch
          %601 = sbr.rel (%p599) target = $region100
        $region99: #{tpu_custom_call.1} parent=63 // pred_region
          %602 = dma.done [#allocation15], 16
        $region100: #{tpu_custom_call.1} parent=63 // pred_fallthru
          _
        %s603 = sand.u32 %s64, 1
        %s604 = scalar_lea.sflag [#allocation3], %s603
        %s605 = sand.u32 %s64, 1
        %s606 = smul.addr %s605, 8
        %s607 = scalar_lea.vmem [#allocation2], %s606
        %p608 = pneg %p77
        %p609 = pneg %p74
        %p610 = pneg %p98
        %p611 = pneg %p95
        %p612 = pneg %p119
        %p613 = pneg %p116
        %p614 = pneg %p140
        %p615 = pneg %p137
        %p616 = pneg %p161
        %p617 = pneg %p158
        %p618 = pneg %p182
        %p619 = pneg %p179
        %p620 = pneg %p203
        %p621 = pneg %p200
        %p622 = pneg %p224
        %p623 = pneg %p221
        %p624 = pneg %p245
        %p625 = pneg %p242
        %p626 = scmp.lt.s32.totalorder %s47, 0
        %s627 = scalar_select %p626, %s47, 0
        %s628 = smul.addr %s627, 8
        %s629 = scalar_lea.vmem %s9, %s628
        %p630 = pneg %p271
        %p631 = pneg %p268
        %p632 = scmp.lt.s32.totalorder %s47, 0
        %s633 = scalar_select %p632, %s47, 0
        %s634 = smul.addr %s633, 8
        %s635 = scalar_lea.vmem %s10, %s634
        %p636 = pneg %p297
        %p637 = pneg %p294
        %p638 = pneg %p325
        %p639 = pneg %p322
        %s640 = sand.u32 %s312, 1
        %s641 = scalar_lea.sflag [#allocation4], %s640
        %s642 = sand.u32 %s312, 1
        %s643 = smul.addr %s642, 8
        %s644 = scalar_lea.vmem [#allocation17], %s643
        %p645 = pneg %p353
        %p646 = pneg %p350
        %s647 = sand.u32 %s42, 1
        %s648 = scalar_lea.sflag [#allocation19], %s647
        %s649 = sand.u32 %s340, 1
        %s650 = smul.addr %s649, 4
        %s651 = scalar_lea.vmem [#allocation18], %s650
        %p652 = pneg %p381
        %p653 = pneg %p378
        %s654 = sand.u32 %s42, 1
        %s655 = scalar_lea.sflag [#allocation19], %s654
        %s656 = sand.u32 %s368, 1
        %s657 = smul.addr %s656, 4
        %s658 = scalar_lea.vmem [#allocation20], %s657
        %p659 = pneg %p409
        %p660 = pneg %p406
        %s661 = sand.u32 %s396, 1
        %s662 = scalar_lea.sflag [#allocation22], %s661
        %s663 = sand.u32 %s396, 1
        %s664 = smul.addr %s663, 4
        %s665 = scalar_lea.vmem [#allocation21], %s664
        %p666 = scmp.lt.s32.totalorder %s47, 0
        %s667 = scalar_select %p666, %s47, 0
        %s668 = smul.addr %s667, 8
        %s669 = scalar_lea.vmem %s9, %s668
        %p670 = scmp.lt.s32.totalorder %s47, 0
        %s671 = scalar_select %p670, %s47, 0
        %s672 = smul.addr %s671, 8
        %s673 = scalar_lea.vmem %s10, %s672
        %v675 = vld [vmem:[%s566] sm:$0xff]
        %vm676 = vcmask 261120
        %v677 = vsel %vm676, %v675, 0.0
        %678 = vadd.xlane.f32.xlu0 %v677
        %v679 = vpop.xlane.xlu0 %678
        %v680 = vrcp.pop 32.0
        %v681 = vmul.f32 %v679, %v680
        %v682 = vsub.f32 %v675, %v681
        %v683 = vmul.f32 %v682, %v682
        %v684 = vsel %vm676, %v683, 0.0
        %685 = vadd.xlane.f32.xlu0 %v684
        %v686 = vpop.xlane.xlu0 %685
        %v687 = vmul.f32 %v686, %v680
        %v688 = vadd.f32 %v687, 1e-05
        %v689 = vrsqrt.pop %v688
        %v690 = vmul.f32 %v682, %v689
        %v691 = vld [vmem:[#allocation5] sm:$0x1]
        %v693 = vlaneseq
        %v694 = vshrl.u32 %v693, 7
        %v695 = vsub.s32 0, %v694
        %v696 = vrot.slane %v691, %v695
        %v698 = vmul.f32 %v690, %v696
        %v699 = vld [vmem:[#allocation7] sm:$0x1]
        %v701 = vlaneseq
        %v702 = vshrl.u32 %v701, 7
        %v703 = vsub.s32 0, %v702
        %v704 = vrot.slane %v699, %v703
        %v706 = vadd.f32 %v698, %v704
        %707 = vst.msk [vmem:[%s644] sm:$0xff] %vm676, %v706
        %v708 = vpack.c.bf16 %v706, %v706
        %v709 = vld [vmem:[%s669] sm:$0xff]
        %v710 = vld [vmem:[%s673] sm:$0xff]
        %v711 = vlaneseq
        %v712 = vand.u32 %v711, 127
        %vm713 = vcmp.lt.s32.totalorder %v712, 0
        %v714 = vsub.s32 0, %v712
        %v715 = vsel %vm713, %v714, %v712
        %v716 = vshrl.u32 %v715, 3
        %v717 = vand.u32 %v715, 7
        %v718 = vsub.s32 0, %v717
        %v719 = vsel %vm713, %v718, %v717
        %vm720 = vcmp.ne.s32.totalorder %v719, 0
        %vm721 = vcmp.lt.s32.totalorder %v719, 0
        %vm722 = vmand %vm721, %vm720
        %v723 = vadd.s32 %v719, 8
        %v724 = vsel %vm722, %v723, %v719
        %vm725 = vcmp.lt.s32.totalorder %v724, 4
        %v726 = vld [vmem:[#allocation8] sm:$0xf]
        %v727 = vld [vmem:[#allocation8 + $0x4] sm:$0xf]
        %v728 = vld [vmem:[#allocation8 + $0x8] sm:$0xf]
        %v729 = vld [vmem:[#allocation8 + $0xc] sm:$0xf]
        %v730 = vld [vmem:[#allocation10] sm:$0x1]
        %v732 = vlaneseq
        %v733 = vshrl.u32 %v732, 7
        %v734 = vsub.s32 0, %v733
        %v735 = vrot.slane %v730, %v734
        %v741 = vunpack.c.l.b16 %v726
        %v742 = vunpack.c.l.b16 %v727
        %v743 = vunpack.c.l.b16 %v728
        %v744 = vunpack.c.l.b16 %v729
        %v745 = vpack.c.b16 %v742, %v741
        %v746 = vpack.c.b16 %v744, %v743
        %v750 = vsel %vm676, %v708, 0
        %752 = vmatprep.subr.bf16.mxu0 0
        %753 = vmatpush1.bf16.msra.mxu0 0
        %754 = vmatprep.subr.bf16.mxu0 0
        %755 = vmatpush1.bf16.msra.mxu0 0
        %756 = vmatprep.subr.bf16.mxu0 0
        %757 = vmatpush1.bf16.msra.mxu0 0
        %758 = vmatprep.subr.bf16.mxu0 0
        %759 = vmatpush1.bf16.msra.mxu0 0
        %760 = vmatprep.subr.bf16.mxu0 0
        %761 = vmatpush1.bf16.msra.mxu0 0
        %762 = vmatprep.subr.bf16.mxu0 0
        %763 = vmatpush1.bf16.msra.mxu0 0
        %764 = vmatprep.subr.bf16.mxu0 0
        %765 = vmatpush1.bf16.msra.mxu0 %v746
        %766 = vmatprep.subr.bf16.mxu0 0
        %767 = vmatpush1.bf16.msra.mxu0 %v745
        %768 = vmatprep.subr.bf16.mxu0 0
        %769 = vmatpush2.bf16.msra.mxu0 0
        %770 = vmatprep.subr.bf16.mxu0 0
        %771 = vmatpush2.bf16.msra.mxu0 0
        %772 = vmatprep.subr.bf16.mxu0 0
        %773 = vmatpush2.bf16.msra.mxu0 0
        %774 = vmatprep.subr.bf16.mxu0 0
        %775 = vmatpush2.bf16.msra.mxu0 0
        %776 = vmatprep.subr.bf16.mxu0 0
        %777 = vmatpush2.bf16.msra.mxu0 0
        %778 = vmatprep.subr.bf16.mxu0 0
        %779 = vmatpush2.bf16.msra.mxu0 0
        %780 = vmatprep.subr.bf16.mxu0 0
        %781 = vmatpush2.bf16.msra.mxu0 0
        %782 = vmatprep.subr.bf16.mxu0 0
        %783 = vmatpush2.bf16.msra.mxu0 0
        %784 = vmatprep.mubr.bf16.mxu0 0
        %785 = vmatmul.mubr.bf16.gmra.mxu0 %v750
        %v786 = vpop.f32.mrf.mxu0
        %v787 = vadd.f32 %v735, %v786
        %v788 = vpop.f32.mrf.mxu0
        %v789 = vpop.f32.mrf.mxu0
        %v790 = vpop.f32.mrf.mxu0
        %791 = vdwg.mxu0
        %793 = vrot.lane.b32.xlu0 %v787, 100
        %v794 = vpop.permute.xlu0 %793
        %796 = vrot.lane.b32.xlu0 %v787, 4
        %v797 = vpop.permute.xlu0 %796
        %vm799 = vcmask 31744
        %v800 = vsel %vm799, %v794, %v797
        %801 = vrot.lane.b32.xlu0 %v787, 124
        %v802 = vpop.permute.xlu0 %801
        %804 = vrot.lane.b32.xlu0 %v787, 28
        %v805 = vpop.permute.xlu0 %804
        %vm807 = vcmask 228352
        %v808 = vsel %vm807, %v802, %v805
        %v809 = vsub.f32 0.0, %v808
        %v810 = vsel %vm725, 1, 0
        %vm811 = vcmp.eq.s32.totalorder %v810, 1
        %v812 = vsel %vm811, %v809, %v800
        %v813 = vmul.f32 %v787, %v709
        %v814 = vmul.f32 %v812, %v710
        %v815 = vadd.f32 %v813, %v814
        %v816 = vpack.c.bf16 %v815, %v815
        %vm817 = vcmask 257024
        %818 = vst.msk [vmem:[%s651] sm:$0xf] %vm817, %v816
        %v819 = vld [vmem:[#allocation11] sm:$0xf]
        %v820 = vld [vmem:[#allocation11 + $0x4] sm:$0xf]
        %v821 = vld [vmem:[#allocation11 + $0x8] sm:$0xf]
        %v822 = vld [vmem:[#allocation11 + $0xc] sm:$0xf]
        %v823 = vld [vmem:[#allocation13] sm:$0x1]
        %v825 = vlaneseq
        %v826 = vshrl.u32 %v825, 7
        %v827 = vsub.s32 0, %v826
        %v828 = vrot.slane %v823, %v827
        %v834 = vunpack.c.l.b16 %v819
        %v835 = vunpack.c.l.b16 %v820
        %v836 = vunpack.c.l.b16 %v821
        %v837 = vunpack.c.l.b16 %v822
        %v838 = vpack.c.b16 %v835, %v834
        %v839 = vpack.c.b16 %v837, %v836
        %842 = vmatprep.subr.bf16.mxu0 0
        %843 = vmatpush1.bf16.msra.mxu0 0
        %844 = vmatprep.subr.bf16.mxu0 0
        %845 = vmatpush1.bf16.msra.mxu0 0
        %846 = vmatprep.subr.bf16.mxu0 0
        %847 = vmatpush1.bf16.msra.mxu0 0
        %848 = vmatprep.subr.bf16.mxu0 0
        %849 = vmatpush1.bf16.msra.mxu0 0
        %850 = vmatprep.subr.bf16.mxu0 0
        %851 = vmatpush1.bf16.msra.mxu0 0
        %852 = vmatprep.subr.bf16.mxu0 0
        %853 = vmatpush1.bf16.msra.mxu0 0
        %854 = vmatprep.subr.bf16.mxu0 0
        %855 = vmatpush1.bf16.msra.mxu0 %v839
        %856 = vmatprep.subr.bf16.mxu0 0
        %857 = vmatpush1.bf16.msra.mxu0 %v838
        %858 = vmatprep.subr.bf16.mxu0 0
        %859 = vmatpush2.bf16.msra.mxu0 0
        %860 = vmatprep.subr.bf16.mxu0 0
        %861 = vmatpush2.bf16.msra.mxu0 0
        %862 = vmatprep.subr.bf16.mxu0 0
        %863 = vmatpush2.bf16.msra.mxu0 0
        %864 = vmatprep.subr.bf16.mxu0 0
        %865 = vmatpush2.bf16.msra.mxu0 0
        %866 = vmatprep.subr.bf16.mxu0 0
        %867 = vmatpush2.bf16.msra.mxu0 0
        %868 = vmatprep.subr.bf16.mxu0 0
        %869 = vmatpush2.bf16.msra.mxu0 0
        %870 = vmatprep.subr.bf16.mxu0 0
        %871 = vmatpush2.bf16.msra.mxu0 0
        %872 = vmatprep.subr.bf16.mxu0 0
        %873 = vmatpush2.bf16.msra.mxu0 0
        %874 = vmatprep.mubr.bf16.mxu0 0
        %875 = vmatmul.mubr.bf16.gmra.mxu0 %v750
        %v876 = vpop.f32.mrf.mxu0
        %v877 = vadd.f32 %v828, %v876
        %v878 = vpop.f32.mrf.mxu0
        %v879 = vpop.f32.mrf.mxu0
        %v880 = vpop.f32.mrf.mxu0
        %881 = vdwg.mxu0
        %883 = vrot.lane.b32.xlu0 %v877, 100
        %v884 = vpop.permute.xlu0 %883
        %886 = vrot.lane.b32.xlu0 %v877, 4
        %v887 = vpop.permute.xlu0 %886
        %v889 = vsel %vm799, %v884, %v887
        %890 = vrot.lane.b32.xlu0 %v877, 124
        %v891 = vpop.permute.xlu0 %890
        %893 = vrot.lane.b32.xlu0 %v877, 28
        %v894 = vpop.permute.xlu0 %893
        %v896 = vsel %vm807, %v891, %v894
        %v897 = vsub.f32 0.0, %v896
        %v898 = vsel %vm811, %v897, %v889
        %v899 = vmul.f32 %v877, %v709
        %v900 = vmul.f32 %v898, %v710
        %v901 = vadd.f32 %v899, %v900
        %v902 = vpack.c.bf16 %v901, %v901
        %903 = vst.msk [vmem:[%s658] sm:$0xf] %vm817, %v902
        %v904 = vld [vmem:[#allocation14] sm:$0xf]
        %v905 = vld [vmem:[#allocation14 + $0x4] sm:$0xf]
        %v906 = vld [vmem:[#allocation14 + $0x8] sm:$0xf]
        %v907 = vld [vmem:[#allocation14 + $0xc] sm:$0xf]
        %v908 = vld [vmem:[#allocation16] sm:$0x1]
        %v910 = vlaneseq
        %v911 = vshrl.u32 %v910, 7
        %v912 = vsub.s32 0, %v911
        %v913 = vrot.slane %v908, %v912
        %v919 = vunpack.c.l.b16 %v904
        %v920 = vunpack.c.l.b16 %v905
        %v921 = vunpack.c.l.b16 %v906
        %v922 = vunpack.c.l.b16 %v907
        %v923 = vpack.c.b16 %v920, %v919
        %v924 = vpack.c.b16 %v922, %v921
        %927 = vmatprep.subr.bf16.mxu0 0
        %928 = vmatpush1.bf16.msra.mxu0 0
        %929 = vmatprep.subr.bf16.mxu0 0
        %930 = vmatpush1.bf16.msra.mxu0 0
        %931 = vmatprep.subr.bf16.mxu0 0
        %932 = vmatpush1.bf16.msra.mxu0 0
        %933 = vmatprep.subr.bf16.mxu0 0
        %934 = vmatpush1.bf16.msra.mxu0 0
        %935 = vmatprep.subr.bf16.mxu0 0
        %936 = vmatpush1.bf16.msra.mxu0 0
        %937 = vmatprep.subr.bf16.mxu0 0
        %938 = vmatpush1.bf16.msra.mxu0 0
        %939 = vmatprep.subr.bf16.mxu0 0
        %940 = vmatpush1.bf16.msra.mxu0 %v924
        %941 = vmatprep.subr.bf16.mxu0 0
        %942 = vmatpush1.bf16.msra.mxu0 %v923
        %943 = vmatprep.subr.bf16.mxu0 0
        %944 = vmatpush2.bf16.msra.mxu0 0
        %945 = vmatprep.subr.bf16.mxu0 0
        %946 = vmatpush2.bf16.msra.mxu0 0
        %947 = vmatprep.subr.bf16.mxu0 0
        %948 = vmatpush2.bf16.msra.mxu0 0
        %949 = vmatprep.subr.bf16.mxu0 0
        %950 = vmatpush2.bf16.msra.mxu0 0
        %951 = vmatprep.subr.bf16.mxu0 0
        %952 = vmatpush2.bf16.msra.mxu0 0
        %953 = vmatprep.subr.bf16.mxu0 0
        %954 = vmatpush2.bf16.msra.mxu0 0
        %955 = vmatprep.subr.bf16.mxu0 0
        %956 = vmatpush2.bf16.msra.mxu0 0
        %957 = vmatprep.subr.bf16.mxu0 0
        %958 = vmatpush2.bf16.msra.mxu0 0
        %959 = vmatprep.mubr.bf16.mxu0 0
        %960 = vmatmul.mubr.bf16.gmra.mxu0 %v750
        %v961 = vpop.f32.mrf.mxu0
        %v962 = vadd.f32 %v913, %v961
        %v963 = vpop.f32.mrf.mxu0
        %v964 = vpop.f32.mrf.mxu0
        %v965 = vpop.f32.mrf.mxu0
        %966 = vdwg.mxu0
        %v967 = vpack.c.bf16 %v962, %v962
        %968 = vst.msk [vmem:[%s665] sm:$0xf] %vm817, %v967
        %s969 = sand.u32 %s312, 1
        %s970 = scalar_lea.sflag [#allocation4], %s969
        %s971 = sand.u32 %s312, 1
        %s972 = smul.addr %s971, 8
        %s973 = scalar_lea.vmem [#allocation17], %s972
        %s974 = sand.u32 %s42, 1
        %s975 = scalar_lea.sflag [#allocation19], %s974
        %s976 = sand.u32 %s340, 1
        %s977 = smul.addr %s976, 4
        %s978 = scalar_lea.vmem [#allocation18], %s977
        %s979 = sand.u32 %s42, 1
        %s980 = scalar_lea.sflag [#allocation19], %s979
        %s981 = sand.u32 %s368, 1
        %s982 = smul.addr %s981, 4
        %s983 = scalar_lea.vmem [#allocation20], %s982
        %s984 = sand.u32 %s396, 1
        %s985 = scalar_lea.sflag [#allocation22], %s984
        %s986 = sand.u32 %s396, 1
        %s987 = smul.addr %s986, 4
        %s988 = scalar_lea.vmem [#allocation21], %s987
        // Predicated region
        $region101: #{tpu_custom_call.1} parent=63 // pred_check
          %p989 = pneg %p322
        $region102: #{tpu_custom_call.1} parent=63 // pred_check_branch
          %991 = sbr.rel (%p989) target = $region104
        $region103: #{tpu_custom_call.1} parent=63 // pred_region
          %s993 = ssub.s32 128, 128
          %994 = vsyncadd %s970, %s993
          %s995 = sadd.s32 %s47, %s46
          %s996 = smul.addr %s995, 128
          %s997 = scalar_lea.hbm %s11, %s996
          %s999 = sshll.u32 %s973, 4
          %s1000 = int_to_ptr.vmem [resolvable:$true] %s999
          %1002 = dma.vmem_to_hbm [thread:$0]  %s1000, 128, %s997, %s970
        $region104: #{tpu_custom_call.1} parent=63 // pred_fallthru
          _
        // Predicated region
        $region105: #{tpu_custom_call.1} parent=63 // pred_check
          %p1003 = pneg %p350
        $region106: #{tpu_custom_call.1} parent=63 // pred_check_branch
          %1005 = sbr.rel (%p1003) target = $region108
        $region107: #{tpu_custom_call.1} parent=63 // pred_region
          %s1007 = ssub.s32 64, 64
          %1008 = vsyncadd %s975, %s1007
          %s1009 = sadd.s32 %s47, %s46
          %s1010 = smul.addr %s1009, 64
          %s1011 = scalar_lea.hbm %s12, %s1010
          %s1013 = sshll.u32 %s978, 4
          %s1014 = int_to_ptr.vmem [resolvable:$true] %s1013
          %1016 = dma.vmem_to_hbm [thread:$0]  %s1014, 64, %s1011, %s975
        $region108: #{tpu_custom_call.1} parent=63 // pred_fallthru
          _
        // Predicated region
        $region109: #{tpu_custom_call.1} parent=63 // pred_check
          %p1017 = pneg %p378
        $region110: #{tpu_custom_call.1} parent=63 // pred_check_branch
          %1019 = sbr.rel (%p1017) target = $region112
        $region111: #{tpu_custom_call.1} parent=63 // pred_region
          %s1021 = ssub.s32 64, 64
          %1022 = vsyncadd %s980, %s1021
          %s1023 = sadd.s32 %s47, %s46
          %s1024 = smul.addr %s1023, 64
          %s1025 = scalar_lea.hbm %s13, %s1024
          %s1027 = sshll.u32 %s983, 4
          %s1028 = int_to_ptr.vmem [resolvable:$true] %s1027
          %1030 = dma.vmem_to_hbm [thread:$0]  %s1028, 64, %s1025, %s980
        $region112: #{tpu_custom_call.1} parent=63 // pred_fallthru
          _
        // Predicated region
        $region113: #{tpu_custom_call.1} parent=63 // pred_check
          %p1031 = pneg %p406
        $region114: #{tpu_custom_call.1} parent=63 // pred_check_branch
          %1033 = sbr.rel (%p1031) target = $region116
        $region115: #{tpu_custom_call.1} parent=63 // pred_region
          %s1035 = ssub.s32 64, 64
          %1036 = vsyncadd %s985, %s1035
          %s1037 = sadd.s32 %s47, %s46
          %s1038 = smul.addr %s1037, 64
          %s1039 = scalar_lea.hbm %s14, %s1038
          %s1041 = sshll.u32 %s988, 4
          %s1042 = int_to_ptr.vmem [resolvable:$true] %s1041
          %1044 = dma.vmem_to_hbm [thread:$0]  %s1042, 64, %s1039, %s985
        $region116: #{tpu_custom_call.1} parent=63 // pred_fallthru
          _
      $region64: #{tpu_custom_call.1} parent=5 // pred_fallthru
        _
      %p1045 = scmp.le.s32.totalorder 2, %s37
      // Predicated region
      $region117: #{tpu_custom_call.1} parent=5 // pred_check
        %p1046 = pneg %p1045
      $region118: #{tpu_custom_call.1} parent=5 // pred_check_branch
        %1048 = sbr.rel (%p1046) target = $region120
      $region119: #{tpu_custom_call.1} parent=5 // pred_region
        %s1049 = ssub.s32 %s37, 2
        // Predicated region
        $region121: #{tpu_custom_call.1} parent=119 // pred_check
          %p1050 = pneg %p328
        $region122: #{tpu_custom_call.1} parent=119 // pred_check_branch
          %1052 = sbr.rel (%p1050) target = $region124
        $region123: #{tpu_custom_call.1} parent=119 // pred_region
          %s1053 = sand.u32 %s313, 1
          %s1054 = scalar_lea.sflag [#allocation4], %s1053
          %s1055 = sand.u32 %s313, 1
          %s1056 = smul.addr %s1055, 8
          %s1057 = scalar_lea.vmem [#allocation17], %s1056
          %1058 = dma.done %s1054, 128
        $region124: #{tpu_custom_call.1} parent=119 // pred_fallthru
          _
        // Predicated region
        $region125: #{tpu_custom_call.1} parent=119 // pred_check
          %p1059 = pneg %p356
        $region126: #{tpu_custom_call.1} parent=119 // pred_check_branch
          %1061 = sbr.rel (%p1059) target = $region128
        $region127: #{tpu_custom_call.1} parent=119 // pred_region
          %s1062 = sand.u32 %s43, 1
          %s1063 = scalar_lea.sflag [#allocation19], %s1062
          %s1064 = sand.u32 %s341, 1
          %s1065 = smul.addr %s1064, 4
          %s1066 = scalar_lea.vmem [#allocation18], %s1065
          %1067 = dma.done %s1063, 64
        $region128: #{tpu_custom_call.1} parent=119 // pred_fallthru
          _
        // Predicated region
        $region129: #{tpu_custom_call.1} parent=119 // pred_check
          %p1068 = pneg %p384
        $region130: #{tpu_custom_call.1} parent=119 // pred_check_branch
          %1070 = sbr.rel (%p1068) target = $region132
        $region131: #{tpu_custom_call.1} parent=119 // pred_region
          %s1071 = sand.u32 %s43, 1
          %s1072 = scalar_lea.sflag [#allocation19], %s1071
          %s1073 = sand.u32 %s369, 1
          %s1074 = smul.addr %s1073, 4
          %s1075 = scalar_lea.vmem [#allocation20], %s1074
          %1076 = dma.done %s1072, 64
        $region132: #{tpu_custom_call.1} parent=119 // pred_fallthru
          _
        // Predicated region
        $region133: #{tpu_custom_call.1} parent=119 // pred_check
          %p1077 = pneg %p412
        $region134: #{tpu_custom_call.1} parent=119 // pred_check_branch
          %1079 = sbr.rel (%p1077) target = $region136
        $region135: #{tpu_custom_call.1} parent=119 // pred_region
          %s1080 = sand.u32 %s397, 1
          %s1081 = scalar_lea.sflag [#allocation22], %s1080
          %s1082 = sand.u32 %s397, 1
          %s1083 = smul.addr %s1082, 4
          %s1084 = scalar_lea.vmem [#allocation21], %s1083
          %1085 = dma.done %s1081, 64
        $region136: #{tpu_custom_call.1} parent=119 // pred_fallthru
          _
      $region120: #{tpu_custom_call.1} parent=5 // pred_fallthru
        _
    $region6: #{tpu_custom_call.1} parent=1 // loop_footer
      %s41 = sadd.s32 1, %s37
    $region7: #{tpu_custom_call.1} parent=1 // loop_footer_branch
      %36 = sbr.rel target = $region3
    $region8: #{tpu_custom_call.1} parent=1 // loop_exit
      _
    %1086 = vsyncpa [#allocation3], 1
    %s1087 = scalar_lea.sflag [#allocation3], 1
    %1088 = vsyncpa %s1087, 1
    %1089 = vsyncpa [#allocation6], 1
    %1090 = vsyncpa [#allocation9], 1
    %1091 = vsyncpa [#allocation12], 1
    %1092 = vsyncpa [#allocation15], 1
    %1093 = vsyncpa [#allocation4], 1
    %s1094 = scalar_lea.sflag [#allocation4], 1
    %1095 = vsyncpa %s1094, 1
    %1096 = vsyncpa [#allocation19], 1
    %s1097 = scalar_lea.sflag [#allocation19], 1
    %1098 = vsyncpa %s1097, 1
    %1099 = vsyncpa [#allocation22], 1
    %s1100 = scalar_lea.sflag [#allocation22], 1
    %1101 = vsyncpa %s1100, 1

</llo_original>
